<compile_context>
chip_gen: v7x
topology: tpu7x:2x2x1
jax: 0.10.0
libtpu: 0.0.40
codegen_flags: <defaults>
</compile_context>

<pallas_src>
import functools

import jax
import jax.numpy as jnp
from jax import lax
from jax.experimental import pallas as pl
from jax.experimental.pallas import tpu as pltpu

LEAKY_SLOPE = 0.1               # assumed LeakyReLU negative slope (YOLO convention)
BN_EPS = 1e-5
VMEM_LIMIT = 32 * 1024 * 1024   # explicit budget: safe on v5e/v6e (128 MiB) and v7x (64 MiB)


def _round_up(v, m):
    return (v + m - 1) // m * m


def _auto_row_tile(oh, owp, cp, batch):
    """Row-tile height from an MXU/VMEM budget (target ~1024 matmul rows per tile at
    CP=128, scaled down for wider channels), keeping the grid >= 2 steps for v7x."""
    target_m = max(256, (1024 * 128) // max(cp, 128))
    toh = max(1, min(oh, max(1, target_m // owp)))
    if batch * ((oh + toh - 1) // toh) < 2 and oh > 1:
        toh = (oh + 1) // 2            # split one image across both TensorCores
    return toh


# ----------------------------------------------------------------------------
# conv0: 3x3 stride-2 conv (+ folded BN bias) + LeakyReLU.
# The wrapper provides im2col patches (B, OH, OWp, 9*Cin): the 9 taps are ONE matmul
# with K = 9*Cin per row tile (M = TOH*OWp).
# ----------------------------------------------------------------------------
def _conv0_pallas(patches, w, b, *, row_tile, alpha=LEAKY_SLOPE):
    B, OH, OWp, K9 = patches.shape
    CP = w.shape[-1]
    TOH = row_tile
    nrt = pl.cdiv(OH, TOH)
    MO = TOH * OWp

    def kernel(p_ref, w_ref, b_ref, o_ref):
        p = p_ref[0].reshape(MO, K9)
        y = jnp.dot(p, w_ref[...], preferred_element_type=jnp.float32)
        y = y + b_ref[...]                                   # one whole-tile broadcast
        y = jnp.where(y > 0, y, alpha * y)                   # LeakyReLU in f32
        o_ref[0] = y.reshape(TOH, OWp, CP).astype(o_ref.dtype)

    return pl.pallas_call(
        kernel,
        out_shape=jax.ShapeDtypeStruct((B, OH, OWp, CP), patches.dtype),
        grid=(B, nrt),
        in_specs=[
            pl.BlockSpec((1, TOH, OWp, K9), lambda bb, rt: (bb, rt, 0, 0)),
            pl.BlockSpec((K9, CP), lambda bb, rt: (0, 0)),
            pl.BlockSpec((1, CP), lambda bb, rt: (0, 0)),
        ],
        out_specs=pl.BlockSpec((1, TOH, OWp, CP), lambda bb, rt: (bb, rt, 0, 0)),
        compiler_params=pltpu.CompilerParams(
            dimension_semantics=("parallel", "parallel"),
            vmem_limit_bytes=VMEM_LIMIT),
    )(patches, w, b)


# ----------------------------------------------------------------------------
# Fused ResUnit kernel:  y = LReLU(conv3x3(LReLU(x @ W1 + b1)) + b2) + x
# One pallas_call per ResUnit; the 1x1-conv output h never touches HBM.
# ----------------------------------------------------------------------------
def _resunit_pallas(x, w1, b1, w2, b2, *, ow, row_tile, alpha=LEAKY_SLOPE):
    B, OH, OWp, CP = x.shape
    TOH = row_tile
    nrt = pl.cdiv(OH, TOH)
    R = TOH + 2                        # interior rows + top/bottom halo row
    MO = TOH * OWp
    cdt = x.dtype

    def kernel(xm_ref, xt_ref, xb_ref, w1_ref, b1_ref, w2_ref, b2_ref, o_ref):
        rt = pl.program_id(1)

        # ---- 1x1 conv + BN bias + LeakyReLU over interior + halo rows (one M-batched dot)
        x_all = jnp.concatenate([xt_ref[0], xm_ref[0], xb_ref[0]], axis=0)  # (R, OWp, CP)
        a = jnp.dot(x_all.reshape(R * OWp, CP), w1_ref[...],
                    preferred_element_type=jnp.float32)
        a = a + b1_ref[...]
        a = jnp.where(a > 0, a, alpha * a)
        a = a.reshape(R, OWp, CP)

        # ---- zero padding for the 3x3 conv: rows outside the image (top/bottom edges,
        #      masked tail of the cdiv grid) and lane-padded columns >= OW.
        row_ids = lax.broadcasted_iota(jnp.int32, (R, OWp, 1), 0)
        g_row = rt * TOH + row_ids - 1                       # image row of h row i
        valid = (g_row >= 0) & (g_row < OH)
        if OWp > ow:
            col_ids = lax.broadcasted_iota(jnp.int32, (R, OWp, 1), 1)
            valid = valid & (col_ids < ow)
        h = jnp.where(valid, a, 0.0).astype(cdt)             # (R, OWp, CP)

        # ---- kx packed into the contraction dim: lane blocks = [h(c-1), h(c), h(c+1)]
        zcol = jnp.zeros((R, 1, CP), cdt)
        h_l = jnp.concatenate([zcol, h[:, :OWp - 1, :]], axis=1)  # left neighbour (c-1)
        h_r = jnp.concatenate([h[:, 1:, :], zcol], axis=1)        # right neighbour (c+1)
        hp = jnp.concatenate([h_l, h, h_r], axis=-1)              # (R, OWp, 3*CP)

        # ---- 3x3 conv: three independent MXU pushes (one per ky), K = 3*CP
        d0 = jnp.dot(hp[0:TOH].reshape(MO, 3 * CP), w2_ref[0],
                     preferred_element_type=jnp.float32)
        d1 = jnp.dot(hp[1:TOH + 1].reshape(MO, 3 * CP), w2_ref[1],
                     preferred_element_type=jnp.float32)
        d2 = jnp.dot(hp[2:TOH + 2].reshape(MO, 3 * CP), w2_ref[2],
                     preferred_element_type=jnp.float32)
        y = d0 + d1 + d2 + b2_ref[...]
        y = jnp.where(y > 0, y, alpha * y)                        # LeakyReLU in f32
        y = y + xm_ref[0].reshape(MO, CP).astype(jnp.float32)     # residual add in f32
        o_ref[0] = y.reshape(TOH, OWp, CP).astype(o_ref.dtype)

    return pl.pallas_call(
        kernel,
        out_shape=jax.ShapeDtypeStruct((B, OH, OWp, CP), cdt),
        grid=(B, nrt),
        in_specs=[
            # main row tile (also the residual source)
            pl.BlockSpec((1, TOH, OWp, CP), lambda bb, rt: (bb, rt, 0, 0)),
            # 1-row top / bottom halos (clamped at the edges; zeroed in-kernel when OOB)
            pl.BlockSpec((1, 1, OWp, CP),
                         lambda bb, rt: (bb, jnp.maximum(rt * TOH - 1, 0), 0, 0)),
            pl.BlockSpec((1, 1, OWp, CP),
                         lambda bb, rt: (bb, jnp.minimum((rt + 1) * TOH, OH - 1), 0, 0)),
            # TODO(synk): single-buffer (pl.Buffered(1)) / K-tile these weights for
            #             CP >= 512 so v7x's 64 MiB VMEM keeps a large activation tile.
            pl.BlockSpec((CP, CP), lambda bb, rt: (0, 0)),
            pl.BlockSpec((1, CP), lambda bb, rt: (0, 0)),
            pl.BlockSpec((3, 3 * CP, CP), lambda bb, rt: (0, 0, 0)),
            pl.BlockSpec((1, CP), lambda bb, rt: (0, 0)),
        ],
        out_specs=pl.BlockSpec((1, TOH, OWp, CP), lambda bb, rt: (bb, rt, 0, 0)),
        compiler_params=pltpu.CompilerParams(
            dimension_semantics=("parallel", "parallel"),
            vmem_limit_bytes=VMEM_LIMIT),
    )(x, x, x, w1, b1, w2, b2)


# ----------------------------------------------------------------------------
# Parameter construction (deterministic, eval-mode BN folded into conv)
# ----------------------------------------------------------------------------
def fold_bn(w, gamma, beta, mean, var, eps=BN_EPS):
    scale = gamma / jnp.sqrt(var + eps)
    return w * scale[None, None, None, :], beta - mean * scale


def make_conv_params(key, cin, cout, k):
    kw, kg, kb, km, kv = jax.random.split(key, 5)
    w = jax.random.normal(kw, (k, k, cin, cout), jnp.float32) / jnp.sqrt(k * k * cin)
    gamma = 1.0 + 0.1 * jax.random.normal(kg, (cout,), jnp.float32)
    beta = 0.1 * jax.random.normal(kb, (cout,), jnp.float32)
    mean = 0.1 * jax.random.normal(km, (cout,), jnp.float32)
    var = 0.5 + jnp.abs(jax.random.normal(kv, (cout,), jnp.float32))
    return fold_bn(w, gamma, beta, mean, var)


def make_resblock_params(key, in_channels, out_channels, num_block):
    keys = jax.random.split(key, 1 + 2 * num_block)
    params = {"conv0": make_conv_params(keys[0], in_channels, out_channels, 3),
              "res_units": []}
    for i in range(num_block):
        w1, b1 = make_conv_params(keys[1 + 2 * i], out_channels, out_channels, 1)
        w2, b2 = make_conv_params(keys[2 + 2 * i], out_channels, out_channels, 3)
        params["res_units"].append((w1, b1, w2, b2))
    return params


def _prep_params(params, cp, compute_dtype):
    """Lane-pad channels to CP, fold taps into matmul-ready shapes, cast matmul operands."""
    w0, b0 = params["conv0"]
    kh, kw_, cin, cout = w0.shape
    w0p = jnp.pad(w0, ((0, 0), (0, 0), (0, 0), (0, cp - cout)))
    w0r = w0p.reshape(kh * kw_ * cin, cp).astype(compute_dtype)      # (9*Cin, CP)
    b0p = jnp.pad(b0, (0, cp - cout)).reshape(1, cp).astype(jnp.float32)
    units = []
    for (w1, b1, w2, b2) in params["res_units"]:
        c = w1.shape[-1]
        w1p = jnp.pad(w1[0, 0], ((0, cp - c), (0, cp - c))).astype(compute_dtype)
        b1p = jnp.pad(b1, (0, cp - c)).reshape(1, cp).astype(jnp.float32)
        w2p = jnp.pad(w2, ((0, 0), (0, 0), (0, cp - c), (0, cp - c)))
        w2p = w2p.reshape(3, 3 * cp, cp).astype(compute_dtype)       # ky -> (kx*CP+cin, CP)
        b2p = jnp.pad(b2, (0, cp - c)).reshape(1, cp).astype(jnp.float32)
        units.append((w1p, b1p, w2p, b2p))
    return (w0r, b0p), units


# ----------------------------------------------------------------------------
# ResBlock forward (NCHW in / NCHW out, matching the PyTorch module)
# ----------------------------------------------------------------------------
@functools.partial(jax.jit, static_argnames=("compute_dtype", "row_tile"))
def resblock_forward(x_nchw, params, *, compute_dtype=jnp.bfloat16, row_tile=None):
    B, Cin, H, W = x_nchw.shape
    cout = params["conv0"][0].shape[-1]
    CP = _round_up(max(cout, 128), 128)              # lane-dense channel width

    OH = (H - 2) // 2 + 1                            # pad(1,0,1,0) + 3x3 stride-2 output
    OW = (W - 2) // 2 + 1
    OWp = _round_up(OW, 8)                           # sublane-aligned padded width

    toh = row_tile if row_tile is not None else _auto_row_tile(OH, OWp, CP, B)
    toh = max(1, min(int(toh), OH))

    (w0r, b0p), units = _prep_params(params, CP, compute_dtype)

    # ZeroPad2d((1,0,1,0)) + im2col for the stride-2 3x3 conv, fused with the one mandatory
    # NCHW->NHWC relayout of the raw (smallest) input tensor (single wrapper-side pass).
    x = jnp.transpose(x_nchw, (0, 2, 3, 1))          # NCHW -> NHWC
    xp = jnp.pad(x, ((0, 0), (1, 0), (1, 0), (0, 0)))
    taps = [xp[:, ky:ky + 2 * OH:2, kx:kx + 2 * OW:2, :]
            for ky in range(3) for kx in range(3)]
    patches = jnp.concatenate(taps, axis=-1)         # (B, OH, OW, 9*Cin)
    patches = jnp.pad(patches, ((0, 0), (0, 0), (0, OWp - OW), (0, 0)))
    patches = patches.astype(compute_dtype)

    y = _conv0_pallas(patches, w0r, b0p, row_tile=toh)
    for (w1p, b1p, w2p, b2p) in units:
        y = _resunit_pallas(y, w1p, b1p, w2p, b2p, ow=OW, row_tile=toh)

    y = y[:, :, :OW, :cout].astype(jnp.float32)      # drop width / channel padding
    return jnp.transpose(y, (0, 3, 1, 2))            # NHWC -> NCHW


# ----------------------------------------------------------------------------
# Pure-JAX reference (for correctness check)
# ----------------------------------------------------------------------------
def conv_ref(x, w, b, stride, pad, residual=None, alpha=LEAKY_SLOPE):
    y = jax.lax.conv_general_dilated(
        x, w, window_strides=(stride, stride), padding=[pad[0], pad[1]],
        dimension_numbers=("NHWC", "HWIO", "NHWC"))
    y = y + b
    y = jnp.where(y > 0, y, alpha * y)
    if residual is not None:
        y = y + residual
    return y


def resblock_ref(x_nchw, params):
    x = jnp.transpose(x_nchw, (0, 2, 3, 1))
    w0, b0 = params["conv0"]
    x = conv_ref(x, w0, b0, 2, ((1, 0), (1, 0)))
    for (w1, b1, w2, b2) in params["res_units"]:
        h = conv_ref(x, w1, b1, 1, ((0, 0), (0, 0)))
        x = conv_ref(h, w2, b2, 1, ((1, 1), (1, 1)), residual=x)
    return jnp.transpose(x, (0, 3, 1, 2))


if __name__ == "__main__":
    key = jax.random.PRNGKey(0)
    kx_, kp_ = jax.random.split(key)

    B, Cin, H, W = 2, 4, 16, 16
    Cout, num_block = 8, 2

    x = jax.random.normal(kx_, (B, Cin, H, W), jnp.float32)
    params = make_resblock_params(kp_, Cin, Cout, num_block)

    ref = jax.block_until_ready(resblock_ref(x, params))
    assert ref.shape == (B, Cout, H // 2, W // 2), ref.shape

    # f32 compute path, forced non-divisor row tile (3 over OH=8): exercises the halo
    # clamping/masking AND the cdiv masked-tail logic. Tight tolerance.
    out_a = jax.block_until_ready(
        resblock_forward(x, params, compute_dtype=jnp.float32, row_tile=3))
    assert out_a.shape == ref.shape, out_a.shape
    err_a = float(jnp.max(jnp.abs(out_a - ref)))
    assert jnp.allclose(out_a, ref, atol=1e-3, rtol=1e-3), err_a

    # f32 compute path, auto (budget-sized) row tile: whole image per tile, grid = (B, 1).
    out_b = jax.block_until_ready(
        resblock_forward(x, params, compute_dtype=jnp.float32))
    err_b = float(jnp.max(jnp.abs(out_b - ref)))
    assert jnp.allclose(out_b, ref, atol=1e-3, rtol=1e-3), err_b

    # bf16-operand path (the performance configuration): tolerance reflects bf16 matmul
    # operands / bf16 inter-layer activations with f32 accumulation across 5 conv layers.
    out_c = jax.block_until_ready(
        resblock_forward(x, params, compute_dtype=jnp.bfloat16, row_tile=4))
    err_c = float(jnp.max(jnp.abs(out_c - ref)))
    assert jnp.allclose(out_c, ref, atol=6e-2, rtol=6e-2), err_c

    print("KERNEL_OK")
</pallas_src>

<mosaic_0001>
module attributes {stable_mosaic.version = 11 : i64} {
  func.func @kernel(%arg0: i32, %arg1: i32, %arg2: memref<1x3x8x128xf32, #tpu.memory_space<vmem>>, %arg3: memref<1x1x8x128xf32, #tpu.memory_space<vmem>>, %arg4: memref<1x1x8x128xf32, #tpu.memory_space<vmem>>, %arg5: memref<128x128xf32, #tpu.memory_space<vmem>>, %arg6: memref<1x128xf32, #tpu.memory_space<vmem>>, %arg7: memref<3x384x128xf32, #tpu.memory_space<vmem>>, %arg8: memref<1x128xf32, #tpu.memory_space<vmem>>, %arg9: memref<1x3x8x128xf32, #tpu.memory_space<vmem>>) attributes {dimension_semantics = [#tpu.dimension_semantics<parallel>, #tpu.dimension_semantics<parallel>], iteration_bounds = array<i64: 2, 3>, scalar_prefetch = 0 : i64, scratch_operands = 0 : i64, tpu.core_type = #tpu.core_type<tc>, window_params = [{transform_indices = @transform_0, window_bounds = array<i64: 1, 3, 8, 128>}, {transform_indices = @transform_1, window_bounds = array<i64: 1, 1, 8, 128>}, {transform_indices = @transform_2, window_bounds = array<i64: 1, 1, 8, 128>}, {pipeline_mode = #tpu.pipeline_mode<synchronous>, transform_indices = @transform_3, window_bounds = array<i64: 128, 128>}, {pipeline_mode = #tpu.pipeline_mode<synchronous>, transform_indices = @transform_4, window_bounds = array<i64: 1, 128>}, {pipeline_mode = #tpu.pipeline_mode<synchronous>, transform_indices = @transform_5, window_bounds = array<i64: 3, 384, 128>}, {pipeline_mode = #tpu.pipeline_mode<synchronous>, transform_indices = @transform_6, window_bounds = array<i64: 1, 128>}, {transform_indices = @transform_7, window_bounds = array<i64: 1, 3, 8, 128>}]} {
    %c0 = arith.constant 0 : index
    %c0_0 = arith.constant 0 : index
    %c0_1 = arith.constant 0 : index
    %c0_2 = arith.constant 0 : index
    %0 = vector.load %arg3[%c0, %c0_0, %c0_1, %c0_2] : memref<1x1x8x128xf32, #tpu.memory_space<vmem>>, vector<1x1x8x128xf32>
    %1 = vector.shape_cast %0 : vector<1x1x8x128xf32> to vector<1x8x128xf32>
    %c0_3 = arith.constant 0 : index
    %c0_4 = arith.constant 0 : index
    %c0_5 = arith.constant 0 : index
    %c0_6 = arith.constant 0 : index
    %2 = vector.load %arg2[%c0_3, %c0_4, %c0_5, %c0_6] : memref<1x3x8x128xf32, #tpu.memory_space<vmem>>, vector<1x3x8x128xf32>
    %3 = vector.shape_cast %2 : vector<1x3x8x128xf32> to vector<3x8x128xf32>
    %c0_7 = arith.constant 0 : index
    %c0_8 = arith.constant 0 : index
    %c0_9 = arith.constant 0 : index
    %c0_10 = arith.constant 0 : index
    %4 = vector.load %arg4[%c0_7, %c0_8, %c0_9, %c0_10] : memref<1x1x8x128xf32, #tpu.memory_space<vmem>>, vector<1x1x8x128xf32>
    %5 = vector.shape_cast %4 : vector<1x1x8x128xf32> to vector<1x8x128xf32>
    %6 = tpu.concatenate %1, %3, %5 in 0 : vector<1x8x128xf32>, vector<3x8x128xf32>, vector<1x8x128xf32> -> vector<5x8x128xf32>
    %7 = vector.shape_cast %6 : vector<5x8x128xf32> to vector<40x128xf32>
    %c0_11 = arith.constant 0 : index
    %c0_12 = arith.constant 0 : index
    %8 = vector.load %arg5[%c0_11, %c0_12] : memref<128x128xf32, #tpu.memory_space<vmem>>, vector<128x128xf32>
    %cst = arith.constant dense<0.000000e+00> : vector<40x128xf32>
    %9 = tpu.matmul %7, %8, %cst {dimension_numbers = #tpu.dot_dimension_numbers<[1], [0], [0], [1], [0, 0, 1, 1], [], []>} : vector<40x128xf32>, vector<128x128xf32>, vector<40x128xf32> -> vector<40x128xf32>
    %c0_13 = arith.constant 0 : index
    %c0_14 = arith.constant 0 : index
    %10 = vector.load %arg6[%c0_13, %c0_14] : memref<1x128xf32, #tpu.memory_space<vmem>>, vector<1x128xf32>
    %11 = vector.broadcast %10 : vector<1x128xf32> to vector<40x128xf32>
    %12 = arith.addf %9, %11 : vector<40x128xf32>
    %cst_15 = arith.constant 0.000000e+00 : f32
    %13 = vector.broadcast %cst_15 : f32 to vector<40x128xf32>
    %14 = arith.cmpf ogt, %12, %13 : vector<40x128xf32>
    %cst_16 = arith.constant 1.000000e-01 : f32
    %15 = vector.broadcast %cst_16 : f32 to vector<40x128xf32>
    %16 = arith.mulf %15, %12 : vector<40x128xf32>
    %17 = arith.select %14, %12, %16 : vector<40x128xi1>, vector<40x128xf32>
    %18 = vector.shape_cast %17 : vector<40x128xf32> to vector<5x8x128xf32>
    %19 = tpu.iota {dimensions = array<i32: 0>} : vector<5x8x1xi32>
    %c3_i32 = arith.constant 3 : i32
    %20 = arith.muli %arg1, %c3_i32 : i32
    %21 = vector.broadcast %20 : i32 to vector<5x8x1xi32>
    %22 = arith.addi %21, %19 : vector<5x8x1xi32>
    %c1_i32 = arith.constant 1 : i32
    %23 = vector.broadcast %c1_i32 : i32 to vector<5x8x1xi32>
    %24 = arith.subi %22, %23 : vector<5x8x1xi32>
    %c0_i32 = arith.constant 0 : i32
    %25 = vector.broadcast %c0_i32 : i32 to vector<5x8x1xi32>
    %26 = arith.cmpi sge, %24, %25 : vector<5x8x1xi32>
    %c8_i32 = arith.constant 8 : i32
    %27 = vector.broadcast %c8_i32 : i32 to vector<5x8x1xi32>
    %28 = arith.cmpi slt, %24, %27 : vector<5x8x1xi32>
    %29 = arith.andi %26, %28 : vector<5x8x1xi1>
    %cst_17 = arith.constant 0.000000e+00 : f32
    %30 = vector.shape_cast %29 : vector<5x8x1xi1> to vector<5x8x1xi1>
    %31 = vector.broadcast %30 : vector<5x8x1xi1> to vector<5x8x128xi1>
    %32 = vector.broadcast %cst_17 : f32 to vector<5x8x128xf32>
    %33 = arith.select %31, %18, %32 : vector<5x8x128xi1>, vector<5x8x128xf32>
    %cst_18 = arith.constant 0.000000e+00 : f32
    %34 = vector.broadcast %cst_18 : f32 to vector<5x1x128xf32>
    %35 = vector.extract_strided_slice %33 {offsets = [0, 0, 0], sizes = [5, 7, 128], strides = [1, 1, 1]} : vector<5x8x128xf32> to vector<5x7x128xf32>
    %36 = tpu.concatenate %34, %35 in 1 : vector<5x1x128xf32>, vector<5x7x128xf32> -> vector<5x8x128xf32>
    %37 = vector.extract_strided_slice %33 {offsets = [0, 1, 0], sizes = [5, 7, 128], strides = [1, 1, 1]} : vector<5x8x128xf32> to vector<5x7x128xf32>
    %38 = tpu.concatenate %37, %34 in 1 : vector<5x7x128xf32>, vector<5x1x128xf32> -> vector<5x8x128xf32>
    %39 = tpu.concatenate %36, %33, %38 in 2 : vector<5x8x128xf32>, vector<5x8x128xf32>, vector<5x8x128xf32> -> vector<5x8x384xf32>
    %40 = vector.extract_strided_slice %39 {offsets = [0, 0, 0], sizes = [3, 8, 384], strides = [1, 1, 1]} : vector<5x8x384xf32> to vector<3x8x384xf32>
    %41 = vector.shape_cast %40 : vector<3x8x384xf32> to vector<24x384xf32>
    %c0_19 = arith.constant 0 : index
    %c0_20 = arith.constant 0 : index
    %c0_21 = arith.constant 0 : index
    %42 = vector.load %arg7[%c0_19, %c0_20, %c0_21] : memref<3x384x128xf32, #tpu.memory_space<vmem>>, vector<1x384x128xf32>
    %43 = vector.shape_cast %42 : vector<1x384x128xf32> to vector<384x128xf32>
    %cst_22 = arith.constant dense<0.000000e+00> : vector<24x128xf32>
    %44 = tpu.matmul %41, %43, %cst_22 {dimension_numbers = #tpu.dot_dimension_numbers<[1], [0], [0], [1], [0, 0, 1, 1], [], []>} : vector<24x384xf32>, vector<384x128xf32>, vector<24x128xf32> -> vector<24x128xf32>
    %45 = vector.extract_strided_slice %39 {offsets = [1, 0, 0], sizes = [3, 8, 384], strides = [1, 1, 1]} : vector<5x8x384xf32> to vector<3x8x384xf32>
    %46 = vector.shape_cast %45 : vector<3x8x384xf32> to vector<24x384xf32>
    %c1 = arith.constant 1 : index
    %c0_23 = arith.constant 0 : index
    %c0_24 = arith.constant 0 : index
    %47 = vector.load %arg7[%c1, %c0_23, %c0_24] : memref<3x384x128xf32, #tpu.memory_space<vmem>>, vector<1x384x128xf32>
    %48 = vector.shape_cast %47 : vector<1x384x128xf32> to vector<384x128xf32>
    %cst_25 = arith.constant dense<0.000000e+00> : vector<24x128xf32>
    %49 = tpu.matmul %46, %48, %cst_25 {dimension_numbers = #tpu.dot_dimension_numbers<[1], [0], [0], [1], [0, 0, 1, 1], [], []>} : vector<24x384xf32>, vector<384x128xf32>, vector<24x128xf32> -> vector<24x128xf32>
    %50 = vector.extract_strided_slice %39 {offsets = [2, 0, 0], sizes = [3, 8, 384], strides = [1, 1, 1]} : vector<5x8x384xf32> to vector<3x8x384xf32>
    %51 = vector.shape_cast %50 : vector<3x8x384xf32> to vector<24x384xf32>
    %c2 = arith.constant 2 : index
    %c0_26 = arith.constant 0 : index
    %c0_27 = arith.constant 0 : index
    %52 = vector.load %arg7[%c2, %c0_26, %c0_27] : memref<3x384x128xf32, #tpu.memory_space<vmem>>, vector<1x384x128xf32>
    %53 = vector.shape_cast %52 : vector<1x384x128xf32> to vector<384x128xf32>
    %cst_28 = arith.constant dense<0.000000e+00> : vector<24x128xf32>
    %54 = tpu.matmul %51, %53, %cst_28 {dimension_numbers = #tpu.dot_dimension_numbers<[1], [0], [0], [1], [0, 0, 1, 1], [], []>} : vector<24x384xf32>, vector<384x128xf32>, vector<24x128xf32> -> vector<24x128xf32>
    %55 = arith.addf %44, %49 : vector<24x128xf32>
    %56 = arith.addf %55, %54 : vector<24x128xf32>
    %c0_29 = arith.constant 0 : index
    %c0_30 = arith.constant 0 : index
    %57 = vector.load %arg8[%c0_29, %c0_30] : memref<1x128xf32, #tpu.memory_space<vmem>>, vector<1x128xf32>
    %58 = vector.broadcast %57 : vector<1x128xf32> to vector<24x128xf32>
    %59 = arith.addf %56, %58 : vector<24x128xf32>
    %cst_31 = arith.constant 0.000000e+00 : f32
    %60 = vector.broadcast %cst_31 : f32 to vector<24x128xf32>
    %61 = arith.cmpf ogt, %59, %60 : vector<24x128xf32>
    %cst_32 = arith.constant 1.000000e-01 : f32
    %62 = vector.broadcast %cst_32 : f32 to vector<24x128xf32>
    %63 = arith.mulf %62, %59 : vector<24x128xf32>
    %64 = arith.select %61, %59, %63 : vector<24x128xi1>, vector<24x128xf32>
    %c0_33 = arith.constant 0 : index
    %c0_34 = arith.constant 0 : index
    %c0_35 = arith.constant 0 : index
    %c0_36 = arith.constant 0 : index
    %65 = vector.load %arg2[%c0_33, %c0_34, %c0_35, %c0_36] : memref<1x3x8x128xf32, #tpu.memory_space<vmem>>, vector<1x3x8x128xf32>
    %66 = vector.shape_cast %65 : vector<1x3x8x128xf32> to vector<3x8x128xf32>
    %67 = vector.shape_cast %66 : vector<3x8x128xf32> to vector<24x128xf32>
    %68 = arith.addf %64, %67 : vector<24x128xf32>
    %69 = vector.shape_cast %68 : vector<24x128xf32> to vector<3x8x128xf32>
    %c0_37 = arith.constant 0 : index
    %c0_38 = arith.constant 0 : index
    %c0_39 = arith.constant 0 : index
    %c0_40 = arith.constant 0 : index
    %70 = vector.load %arg9[%c0_37, %c0_38, %c0_39, %c0_40] : memref<1x3x8x128xf32, #tpu.memory_space<vmem>>, vector<1x3x8x128xf32>
    %71 = vector.shape_cast %70 : vector<1x3x8x128xf32> to vector<3x8x128xf32>
    %72 = vector.shape_cast %69 : vector<3x8x128xf32> to vector<1x3x8x128xf32>
    tpu.vector_store %arg9[%c0_37, %c0_38, %c0_39, %c0_40], %72 {strides = array<i32>} : memref<1x3x8x128xf32, #tpu.memory_space<vmem>>, vector<1x3x8x128xf32>,
    return
  }
  func.func @transform_0(%arg0: i32, %arg1: i32) -> (i32, i32, i32, i32) {
    %c0_i32 = arith.constant 0 : i32
    %c0_i32_0 = arith.constant 0 : i32
    %c0_i32_1 = arith.constant 0 : i32
    return %arg0, %arg1, %c0_i32, %c0_i32_0 : i32, i32, i32, i32
  }
  func.func @transform_1(%arg0: i32, %arg1: i32) -> (i32, i32, i32, i32) {
    %c3_i32 = arith.constant 3 : i32
    %0 = arith.muli %arg1, %c3_i32 : i32
    %c1_i32 = arith.constant 1 : i32
    %1 = arith.subi %0, %c1_i32 : i32
    %c0_i32 = arith.constant 0 : i32
    %2 = arith.maxsi %1, %c0_i32 : i32
    %c0_i32_0 = arith.constant 0 : i32
    %c0_i32_1 = arith.constant 0 : i32
    %c0_i32_2 = arith.constant 0 : i32
    return %arg0, %2, %c0_i32_0, %c0_i32_1 : i32, i32, i32, i32
  }
  func.func @transform_2(%arg0: i32, %arg1: i32) -> (i32, i32, i32, i32) {
    %c1_i32 = arith.constant 1 : i32
    %0 = arith.addi %arg1, %c1_i32 : i32
    %c3_i32 = arith.constant 3 : i32
    %1 = arith.muli %0, %c3_i32 : i32
    %c7_i32 = arith.constant 7 : i32
    %2 = arith.minsi %1, %c7_i32 : i32
    %c0_i32 = arith.constant 0 : i32
    %c0_i32_0 = arith.constant 0 : i32
    %c0_i32_1 = arith.constant 0 : i32
    return %arg0, %2, %c0_i32, %c0_i32_0 : i32, i32, i32, i32
  }
  func.func @transform_3(%arg0: i32, %arg1: i32) -> (i32, i32) {
    %c0_i32 = arith.constant 0 : i32
    %c0_i32_0 = arith.constant 0 : i32
    %c0_i32_1 = arith.constant 0 : i32
    return %c0_i32, %c0_i32_0 : i32, i32
  }
  func.func @transform_4(%arg0: i32, %arg1: i32) -> (i32, i32) {
    %c0_i32 = arith.constant 0 : i32
    %c0_i32_0 = arith.constant 0 : i32
    %c0_i32_1 = arith.constant 0 : i32
    return %c0_i32, %c0_i32_0 : i32, i32
  }
  func.func @transform_5(%arg0: i32, %arg1: i32) -> (i32, i32, i32) {
    %c0_i32 = arith.constant 0 : i32
    %c0_i32_0 = arith.constant 0 : i32
    %c0_i32_1 = arith.constant 0 : i32
    %c0_i32_2 = arith.constant 0 : i32
    return %c0_i32, %c0_i32_0, %c0_i32_1 : i32, i32, i32
  }
  func.func @transform_6(%arg0: i32, %arg1: i32) -> (i32, i32) {
    %c0_i32 = arith.constant 0 : i32
    %c0_i32_0 = arith.constant 0 : i32
    %c0_i32_1 = arith.constant 0 : i32
    return %c0_i32, %c0_i32_0 : i32, i32
  }
  func.func @transform_7(%arg0: i32, %arg1: i32) -> (i32, i32, i32, i32) {
    %c0_i32 = arith.constant 0 : i32
    %c0_i32_0 = arith.constant 0 : i32
    %c0_i32_1 = arith.constant 0 : i32
    return %arg0, %arg1, %c0_i32, %c0_i32_0 : i32, i32, i32, i32
  }
}

module attributes {stable_mosaic.version = 11 : i64} {
  func.func @kernel(%arg0: i32, %arg1: i32, %arg2: memref<1x3x8x36xf32, #tpu.memory_space<vmem>>, %arg3: memref<36x128xf32, #tpu.memory_space<vmem>>, %arg4: memref<1x128xf32, #tpu.memory_space<vmem>>, %arg5: memref<1x3x8x128xf32, #tpu.memory_space<vmem>>) attributes {dimension_semantics = [#tpu.dimension_semantics<parallel>, #tpu.dimension_semantics<parallel>], iteration_bounds = array<i64: 2, 3>, scalar_prefetch = 0 : i64, scratch_operands = 0 : i64, tpu.core_type = #tpu.core_type<tc>, window_params = [{transform_indices = @transform_0, window_bounds = array<i64: 1, 3, 8, 36>}, {pipeline_mode = #tpu.pipeline_mode<synchronous>, transform_indices = @transform_1, window_bounds = array<i64: 36, 128>}, {pipeline_mode = #tpu.pipeline_mode<synchronous>, transform_indices = @transform_2, window_bounds = array<i64: 1, 128>}, {transform_indices = @transform_3, window_bounds = array<i64: 1, 3, 8, 128>}]} {
    %c0 = arith.constant 0 : index
    %c0_0 = arith.constant 0 : index
    %c0_1 = arith.constant 0 : index
    %c0_2 = arith.constant 0 : index
    %0 = vector.load %arg2[%c0, %c0_0, %c0_1, %c0_2] : memref<1x3x8x36xf32, #tpu.memory_space<vmem>>, vector<1x3x8x36xf32>
    %1 = vector.shape_cast %0 : vector<1x3x8x36xf32> to vector<3x8x36xf32>
    %2 = vector.shape_cast %1 : vector<3x8x36xf32> to vector<24x36xf32>
    %c0_3 = arith.constant 0 : index
    %c0_4 = arith.constant 0 : index
    %3 = vector.load %arg3[%c0_3, %c0_4] : memref<36x128xf32, #tpu.memory_space<vmem>>, vector<36x128xf32>
    %cst = arith.constant dense<0.000000e+00> : vector<24x128xf32>
    %4 = tpu.matmul %2, %3, %cst {dimension_numbers = #tpu.dot_dimension_numbers<[1], [0], [0], [1], [0, 0, 1, 1], [], []>} : vector<24x36xf32>, vector<36x128xf32>, vector<24x128xf32> -> vector<24x128xf32>
    %c0_5 = arith.constant 0 : index
    %c0_6 = arith.constant 0 : index
    %5 = vector.load %arg4[%c0_5, %c0_6] : memref<1x128xf32, #tpu.memory_space<vmem>>, vector<1x128xf32>
    %6 = vector.broadcast %5 : vector<1x128xf32> to vector<24x128xf32>
    %7 = arith.addf %4, %6 : vector<24x128xf32>
    %cst_7 = arith.constant 0.000000e+00 : f32
    %8 = vector.broadcast %cst_7 : f32 to vector<24x128xf32>
    %9 = arith.cmpf ogt, %7, %8 : vector<24x128xf32>
    %cst_8 = arith.constant 1.000000e-01 : f32
    %10 = vector.broadcast %cst_8 : f32 to vector<24x128xf32>
    %11 = arith.mulf %10, %7 : vector<24x128xf32>
    %12 = arith.select %9, %7, %11 : vector<24x128xi1>, vector<24x128xf32>
    %13 = vector.shape_cast %12 : vector<24x128xf32> to vector<3x8x128xf32>
    %c0_9 = arith.constant 0 : index
    %c0_10 = arith.constant 0 : index
    %c0_11 = arith.constant 0 : index
    %c0_12 = arith.constant 0 : index
    %14 = vector.load %arg5[%c0_9, %c0_10, %c0_11, %c0_12] : memref<1x3x8x128xf32, #tpu.memory_space<vmem>>, vector<1x3x8x128xf32>
    %15 = vector.shape_cast %14 : vector<1x3x8x128xf32> to vector<3x8x128xf32>
    %16 = vector.shape_cast %13 : vector<3x8x128xf32> to vector<1x3x8x128xf32>
    tpu.vector_store %arg5[%c0_9, %c0_10, %c0_11, %c0_12], %16 {strides = array<i32>} : memref<1x3x8x128xf32, #tpu.memory_space<vmem>>, vector<1x3x8x128xf32>,
    return
  }
  func.func @transform_0(%arg0: i32, %arg1: i32) -> (i32, i32, i32, i32) {
    %c0_i32 = arith.constant 0 : i32
    %c0_i32_0 = arith.constant 0 : i32
    %c0_i32_1 = arith.constant 0 : i32
    return %arg0, %arg1, %c0_i32, %c0_i32_0 : i32, i32, i32, i32
  }
  func.func @transform_1(%arg0: i32, %arg1: i32) -> (i32, i32) {
    %c0_i32 = arith.constant 0 : i32
    %c0_i32_0 = arith.constant 0 : i32
    %c0_i32_1 = arith.constant 0 : i32
    return %c0_i32, %c0_i32_0 : i32, i32
  }
  func.func @transform_2(%arg0: i32, %arg1: i32) -> (i32, i32) {
    %c0_i32 = arith.constant 0 : i32
    %c0_i32_0 = arith.constant 0 : i32
    %c0_i32_1 = arith.constant 0 : i32
    return %c0_i32, %c0_i32_0 : i32, i32
  }
  func.func @transform_3(%arg0: i32, %arg1: i32) -> (i32, i32, i32, i32) {
    %c0_i32 = arith.constant 0 : i32
    %c0_i32_0 = arith.constant 0 : i32
    %c0_i32_1 = arith.constant 0 : i32
    return %arg0, %arg1, %c0_i32, %c0_i32_0 : i32, i32, i32, i32
  }
}

</mosaic_0001>

<llo_original>
// kernel: resblock_forward.3
$region0: #{resblock_forward.3}
  #allocation0 [shape = 'u32[]', space=smem, size = 0x4, offset = 0x4, fixed_abs, tag = 'smem constant byte address 0x4 - core index']
  #allocation1 [shape = 'u32[144,128]{1,0:T(1,128)}', space=vmem, size = 0x12000, scoped, tag = 'internal scratch']
  %s0 = inlined_call_operand.vmem [shape: f32[2,8,8,36], index: 0, kind: input, shape index: {}]
  %s1 = inlined_call_operand.vmem [shape: f32[36,128], index: 1, kind: input, shape index: {}]
  %s2 = inlined_call_operand.vmem [shape: f32[1,128], index: 2, kind: input, shape index: {}]
  %s3 = inlined_call_operand.vmem [shape: f32[2,8,8,128], index: 3, kind: output, shape index: {}]
  %s4 = sld [smem:[#allocation0]]
  $region93: #{resblock_forward.3} parent=0
    _
  %s6 = ssub.s32 1, %s4
  %s7 = scalar_select 0, %s6, %s4
  $region1: #{resblock_forward.3} parent=0
    #allocation2 [shape = 'u8[24576]{0}', space=vmem, size = 0x6000, scoped, tag = 'output window, operand 0']
    loop: start=0, step=1, limit=8
    $region2: #{resblock_forward.3} parent=1 // loop_pre_header
      _
    $region3: #{resblock_forward.3} parent=1 // loop_header
      %s9 = sphi 0, %s13
      %p10 = scmp.ge.s32.totalorder %s9, 8
      %s16 = sphi 0, %s28
      %s17 = sphi 0, %s24
      %s18 = sphi 0, %s16
      %s19 = sphi 0, %s17
      %s20 = sphi 0, %s18
      %s21 = sphi 0, %s19
      %s33 = sphi 0, %s35
      %s36 = sphi 0, %s33
      %s37 = sphi 0, %s36
      %s53 = sphi 0, %s37
      %s57 = sphi 0, %s57
      %s59 = sphi 0, %s57
      %s60 = sphi 0, %s59
      %s74 = sphi 0, %s60
      %s78 = sphi 0, %s78
      %s80 = sphi 0, %s78
      %s81 = sphi 0, %s80
      %s95 = sphi 0, %s81
      %s103 = sphi 0, %s105
      %s106 = sphi 0, %s103
      %s107 = sphi 0, %s106
      %s123 = sphi 0, %s107
    $region4: #{resblock_forward.3} parent=1 // loop_header_branch
      %12 = sbr.rel (%p10) target = $region8
    $region5: #{resblock_forward.3} parent=1 // loop_body
      %s14 = ssub.s32 %s9, 1
      %s15 = ssub.s32 %s9, 2
      %s22 = sadd.s32 1, %s17
      %p23 = scmp.ge.s32.totalorder %s22, 3
      %s24 = scalar_select %p23, 0, %s22
      %s25 = sadd.s32 1, %s16
      %s26 = scalar_select %p23, %s25, %s16
      %p27 = scmp.ge.s32.totalorder %s26, 2
      %s28 = scalar_select %p27, 0, %s26
      %s29 = ssub.s32 %s16, %s28
      %s30 = ssub.s32 %s17, %s24
      %s31 = sor.u32 %s29, %s30
      %p32 = scmp.eq.s32.totalorder %s31, 0
      %s34 = sadd.s32 %s33, 1
      %s35 = scalar_select %p32, %s33, %s34
      %p38 = pneg %p32
      %p39 = scmp.eq.s32.totalorder %s9, 5
      %p40 = por %p38, %p39
      %p41 = scmp.ne.s32.totalorder %s33, %s36
      %p42 = scmp.eq.s32.totalorder %s9, 0
      %p43 = por %p41, %p42
      %p44 = scmp.ne.s32.totalorder %s33, %s36
      %p45 = scmp.eq.s32.totalorder %s14, 5
      %p46 = por %p44, %p45
      %p47 = scmp.ne.s32.totalorder %s36, %s37
      %p48 = scmp.eq.s32.totalorder %s14, 0
      %p49 = por %p47, %p48
      %p50 = scmp.ne.s32.totalorder %s36, %s37
      %p51 = scmp.eq.s32.totalorder %s15, 5
      %p52 = por %p50, %p51
      %p54 = scmp.ne.s32.totalorder %s37, %s53
      %p55 = scmp.eq.s32.totalorder %s15, 0
      %p56 = por %p54, %p55
      %s58 = sadd.s32 %s57, 1
      %p61 = scmp.eq.s32.totalorder %s9, 5
      %p62 = scmp.ne.s32.totalorder %s57, %s59
      %p63 = scmp.eq.s32.totalorder %s9, 0
      %p64 = por %p62, %p63
      %p65 = scmp.ne.s32.totalorder %s57, %s59
      %p66 = scmp.eq.s32.totalorder %s14, 5
      %p67 = por %p65, %p66
      %p68 = scmp.ne.s32.totalorder %s59, %s60
      %p69 = scmp.eq.s32.totalorder %s14, 0
      %p70 = por %p68, %p69
      %p71 = scmp.ne.s32.totalorder %s59, %s60
      %p72 = scmp.eq.s32.totalorder %s15, 5
      %p73 = por %p71, %p72
      %p75 = scmp.ne.s32.totalorder %s60, %s74
      %p76 = scmp.eq.s32.totalorder %s15, 0
      %p77 = por %p75, %p76
      %s79 = sadd.s32 %s78, 1
      %p82 = scmp.eq.s32.totalorder %s9, 5
      %p83 = scmp.ne.s32.totalorder %s78, %s80
      %p84 = scmp.eq.s32.totalorder %s9, 0
      %p85 = por %p83, %p84
      %p86 = scmp.ne.s32.totalorder %s78, %s80
      %p87 = scmp.eq.s32.totalorder %s14, 5
      %p88 = por %p86, %p87
      %p89 = scmp.ne.s32.totalorder %s80, %s81
      %p90 = scmp.eq.s32.totalorder %s14, 0
      %p91 = por %p89, %p90
      %p92 = scmp.ne.s32.totalorder %s80, %s81
      %p93 = scmp.eq.s32.totalorder %s15, 5
      %p94 = por %p92, %p93
      %p96 = scmp.ne.s32.totalorder %s81, %s95
      %p97 = scmp.eq.s32.totalorder %s15, 0
      %p98 = por %p96, %p97
      %s99 = ssub.s32 %s16, %s28
      %s100 = ssub.s32 %s17, %s24
      %s101 = sor.u32 %s99, %s100
      %p102 = scmp.eq.s32.totalorder %s101, 0
      %s104 = sadd.s32 %s103, 1
      %s105 = scalar_select %p102, %s103, %s104
      %p108 = pneg %p102
      %p109 = scmp.eq.s32.totalorder %s9, 5
      %p110 = por %p108, %p109
      %p111 = scmp.ne.s32.totalorder %s103, %s106
      %p112 = scmp.eq.s32.totalorder %s9, 0
      %p113 = por %p111, %p112
      %p114 = scmp.ne.s32.totalorder %s103, %s106
      %p115 = scmp.eq.s32.totalorder %s14, 5
      %p116 = por %p114, %p115
      %p117 = scmp.ne.s32.totalorder %s106, %s107
      %p118 = scmp.eq.s32.totalorder %s14, 0
      %p119 = por %p117, %p118
      %p120 = scmp.ne.s32.totalorder %s106, %s107
      %p121 = scmp.eq.s32.totalorder %s15, 5
      %p122 = por %p120, %p121
      %p124 = scmp.ne.s32.totalorder %s107, %s123
      %p125 = scmp.eq.s32.totalorder %s15, 0
      %p126 = por %p124, %p125
      %p127 = scmp.le.s32.totalorder 1, %s9
      %p128 = scmp.lt.s32.totalorder %s9, 7
      %p129 = pnand %p127, %p128
      %p130 = pneg %p129
      // Predicated region
      $region9: #{resblock_forward.3} parent=5 // pred_check
        _
      $region10: #{resblock_forward.3} parent=5 // pred_check_branch
        %132 = sbr.rel (%p129) target = $region12
      $region11: #{resblock_forward.3} parent=5 // pred_region
        %s133 = ssub.s32 %s9, 1
        // Predicated region
        $region13: #{resblock_forward.3} parent=11 // pred_check
          %p134 = pneg %p70
        $region14: #{resblock_forward.3} parent=11 // pred_check_branch
          %136 = sbr.rel (%p134) target = $region16
        $region15: #{resblock_forward.3} parent=11 // pred_region
          _
        $region16: #{resblock_forward.3} parent=11 // pred_fallthru
          _
        // Predicated region
        $region17: #{resblock_forward.3} parent=11 // pred_check
          %p137 = pneg %p91
        $region18: #{resblock_forward.3} parent=11 // pred_check_branch
          %139 = sbr.rel (%p137) target = $region20
        $region19: #{resblock_forward.3} parent=11 // pred_region
          _
        $region20: #{resblock_forward.3} parent=11 // pred_fallthru
          _
      $region12: #{resblock_forward.3} parent=5 // pred_fallthru
        _
      %p140 = scmp.lt.s32.totalorder %s9, 6
      // Predicated region
      $region21: #{resblock_forward.3} parent=5 // pred_check
        %p141 = pneg %p140
      $region22: #{resblock_forward.3} parent=5 // pred_check_branch
        %143 = sbr.rel (%p141) target = $region24
      $region23: #{resblock_forward.3} parent=5 // pred_region
        // Predicated region
        $region25: #{resblock_forward.3} parent=23 // pred_check
          %p144 = pneg %p43
        $region26: #{resblock_forward.3} parent=23 // pred_check_branch
          %146 = sbr.rel (%p144) target = $region28
        $region27: #{resblock_forward.3} parent=23 // pred_region
          %s147 = smul.u32 3, %s17
          %s148 = ssub.s32 8, %s147
          %p149 = scmp.lt.s32.totalorder %s148, 3
          %s150 = scalar_select %p149, %s148, 3
          %s151 = smul.u32 128, %s150
          %p152 = scmp.lt.s32.totalorder %s16, 1
          %s153 = scalar_select %p152, %s16, 1
          %p154 = scmp.lt.s32.totalorder %s147, 7
          %s155 = scalar_select %p154, %s147, 7
          %s156 = smul.addr %s153, 8
          %s157 = sadd.s32 %s155, %s156
          %s158 = smul.addr %s157, 8
          %s159 = scalar_lea.vmem %s0, %s158
          %s160 = smul.u32 3, %s17
          %s161 = ssub.s32 8, %s160
          %p162 = scmp.lt.s32.totalorder %s161, 3
          %s163 = scalar_select %p162, %s161, 3
          %s164 = smul.u32 128, %s163
        $region28: #{resblock_forward.3} parent=23 // pred_fallthru
          _
      $region24: #{resblock_forward.3} parent=5 // pred_fallthru
        _
      %p165 = scmp.le.s32.totalorder 1, %s9
      %p166 = scmp.lt.s32.totalorder %s9, 7
      %p167 = pnand %p165, %p166
      %p168 = pneg %p167
      // Predicated region
      $region29: #{resblock_forward.3} parent=5 // pred_check
        _
      $region30: #{resblock_forward.3} parent=5 // pred_check_branch
        %170 = sbr.rel (%p167) target = $region32
      $region31: #{resblock_forward.3} parent=5 // pred_region
        %s171 = ssub.s32 %s9, 1
        %s172 = smul.u32 3, %s19
        %s173 = ssub.s32 8, %s172
        %p174 = scmp.lt.s32.totalorder %s173, 3
        %s175 = scalar_select %p174, %s173, 3
        %s176 = smul.u32 128, %s175
        %p177 = scmp.lt.s32.totalorder %s18, 1
        %s178 = scalar_select %p177, %s18, 1
        %p179 = scmp.lt.s32.totalorder %s172, 7
        %s180 = scalar_select %p179, %s172, 7
        %s181 = smul.addr %s178, 8
        %s182 = sadd.s32 %s180, %s181
        %s183 = smul.addr %s182, 8
        %s184 = scalar_lea.vmem %s0, %s183
        %p185 = pneg %p49
        %p186 = pneg %p46
        %p187 = pneg %p70
        %p188 = pneg %p67
        %p189 = pneg %p91
        %p190 = pneg %p88
        %p191 = pneg %p119
        %p192 = pneg %p116
        %s193 = sand.u32 %s106, 1
        %s194 = sand.u32 %s106, 1
        %s195 = smul.addr %s194, 24
        %s196 = scalar_lea.vmem [#allocation2], %s195
        %s197 = smul.u32 3, %s19
        %s198 = ssub.s32 8, %s197
        %p199 = scmp.lt.s32.totalorder %s198, 3
        %s200 = scalar_select %p199, %s198, 3
        %s201 = smul.u32 128, %s200
        %p202 = scmp.lt.s32.totalorder %s18, 1
        %s203 = scalar_select %p202, %s18, 1
        %p204 = scmp.lt.s32.totalorder %s197, 7
        %s205 = scalar_select %p204, %s197, 7
        %s206 = smul.addr %s203, 8
        %s207 = sadd.s32 %s205, %s206
        %s208 = smul.addr %s207, 8
        %s209 = scalar_lea.vmem %s0, %s208
        %s210 = smul.u32 3, %s19
        %s211 = ssub.s32 8, %s210
        %p212 = scmp.lt.s32.totalorder %s211, 3
        %s213 = scalar_select %p212, %s211, 3
        %s214 = smul.u32 128, %s213
        %s215 = smul.u32 3, %s19
        %s216 = ssub.s32 8, %s215
        %p217 = scmp.lt.s32.totalorder %s216, 3
        %s218 = scalar_select %p217, %s216, 3
        %s219 = smul.u32 128, %s218
        %v220 = vld [vmem:[%s209] sm:$0xff]
        %v221 = vld [vmem:[%s209 + $0x8] sm:$0xff]
        %v222 = vld [vmem:[%s209 + $0x10] sm:$0xff]
        %v223 = vld [vmem:[%s1] sm:$0xff]
        %v224 = vld [vmem:[%s1 + $0x8] sm:$0xff]
        %v225 = vld [vmem:[%s1 + $0x10] sm:$0xff]
        %v226 = vld [vmem:[%s1 + $0x18] sm:$0xff]
        %v227 = vld [vmem:[%s1 + $0x20] sm:$0xf]
        %v228 = vld [vmem:[%s2] sm:$0x1]
        %v230 = vlaneseq
        %v231 = vshrl.u32 %v230, 7
        %v232 = vsub.s32 0, %v231
        %v233 = vrot.slane %v228, %v232
        %vm235 = vcmask 293888
        %v237 = vsel %vm235, %v220, 0
        %v240 = vsel %vm235, %v221, 0
        %v243 = vsel %vm235, %v222, 0
        %vm245 = vcmask 1043456
        %v247 = vsel %vm245, %v227, 0
        %249 = vmatprep.subr.mxu0 0.0
        %250 = vmatpush1.msra.mxu0 %v223
        %251 = vmatprep.subr.mxu0 0.0
        %252 = vmatpush1.msra.mxu0 %v224
        %253 = vmatprep.subr.mxu0 0.0
        %254 = vmatpush1.msra.mxu0 %v225
        %255 = vmatprep.subr.mxu0 0.0
        %256 = vmatpush1.msra.mxu0 %v226
        %257 = vmatprep.subr.mxu0 0.0
        %258 = vmatpush1.msra.mxu0 %v247
        %259 = vmatprep.subr.mxu0 0.0
        %260 = vmatpush1.msra.mxu0 0.0
        %261 = vmatprep.subr.mxu0 0.0
        %262 = vmatpush1.msra.mxu0 0.0
        %263 = vmatprep.subr.mxu0 0.0
        %264 = vmatpush1.msra.mxu0 0.0
        %265 = vmatprep.subr.mxu0 0.0
        %266 = vmatpush1.msra.mxu0 0.0
        %267 = vmatprep.subr.mxu0 0.0
        %268 = vmatpush1.msra.mxu0 0.0
        %269 = vmatprep.subr.mxu0 0.0
        %270 = vmatpush1.msra.mxu0 0.0
        %271 = vmatprep.subr.mxu0 0.0
        %272 = vmatpush1.msra.mxu0 0.0
        %273 = vmatprep.subr.mxu0 0.0
        %274 = vmatpush1.msra.mxu0 0.0
        %275 = vmatprep.subr.mxu0 0.0
        %276 = vmatpush1.msra.mxu0 0.0
        %277 = vmatprep.subr.mxu0 0.0
        %278 = vmatpush1.msra.mxu0 0.0
        %279 = vmatprep.subr.mxu0 0.0
        %280 = vmatpush1.msra.mxu0 0.0
        %281 = vmatprep.subr.mxu0 0.0
        %282 = vmatpush1.msra.mxu0 0.0
        %283 = vmatprep.subr.mxu0 0.0
        %284 = vmatpush1.msra.mxu0 0.0
        %285 = vmatprep.subr.mxu0 0.0
        %286 = vmatpush1.msra.mxu0 0.0
        %287 = vmatprep.subr.mxu0 0.0
        %288 = vmatpush1.msra.mxu0 0.0
        %289 = vmatprep.subr.mxu0 0.0
        %290 = vmatpush1.msra.mxu0 0.0
        %291 = vmatprep.subr.mxu0 0.0
        %292 = vmatpush1.msra.mxu0 0.0
        %293 = vmatprep.subr.mxu0 0.0
        %294 = vmatpush1.msra.mxu0 0.0
        %295 = vmatprep.subr.mxu0 0.0
        %296 = vmatpush1.msra.mxu0 0.0
        %297 = vmatprep.subr.mxu0 0.0
        %298 = vmatpush1.msra.mxu0 0.0
        %299 = vmatprep.subr.mxu0 0.0
        %300 = vmatpush1.msra.mxu0 0.0
        %301 = vmatprep.subr.mxu0 0.0
        %302 = vmatpush1.msra.mxu0 0.0
        %303 = vmatprep.subr.mxu0 0.0
        %304 = vmatpush1.msra.mxu0 0.0
        %305 = vmatprep.subr.mxu0 0.0
        %306 = vmatpush1.msra.mxu0 0.0
        %307 = vmatprep.subr.mxu0 0.0
        %308 = vmatpush1.msra.mxu0 0.0
        %309 = vmatprep.subr.mxu0 0.0
        %310 = vmatpush1.msra.mxu0 0.0
        %311 = vmatprep.subr.mxu0 0.0
        %312 = vmatpush1.msra.mxu0 0.0
        %313 = vmatprep.mubr.f32.mxu0 0.0
        %314 = vmatmul.mubr.f32.gmra.mrb[0].mxu0 %v237
        %v315 = vpop.f32.mrb[0].mxu0
        %v316 = vadd.f32 %v233, %v315
        %v317 = vpop.f32.mrb[0].mxu0
        %318 = vmatprep.mubr.f32.mxu0 0.0
        %319 = vmatmul.mubr.f32.gmra.mrb[0].mxu0 %v240
        %v320 = vpop.f32.mrb[0].mxu0
        %v321 = vadd.f32 %v233, %v320
        %v322 = vpop.f32.mrb[0].mxu0
        %323 = vmatprep.mubr.f32.mxu0 0.0
        %324 = vmatmul.mubr.f32.gmra.mrb[0].mxu0 %v243
        %v325 = vpop.f32.mrb[0].mxu0
        %v326 = vadd.f32 %v233, %v325
        %v327 = vpop.f32.mrb[0].mxu0
        %328 = vdwg.mxu0
        %vm329 = vcmp.gt.f32.partialorder %v316, 0.0
        %vm330 = vcmp.gt.f32.partialorder %v321, 0.0
        %vm331 = vcmp.gt.f32.partialorder %v326, 0.0
        %v332 = vmul.f32 %v316, 0.1
        %v333 = vmul.f32 %v321, 0.1
        %v334 = vmul.f32 %v326, 0.1
        %v335 = vsel %vm329, %v316, %v332
        %v336 = vsel %vm330, %v321, %v333
        %v337 = vsel %vm331, %v326, %v334
        %338 = vst [vmem:[%s196] sm:$0xff] %v335
        %339 = vst [vmem:[%s196 + $0x8] sm:$0xff] %v336
        %340 = vst [vmem:[%s196 + $0x10] sm:$0xff] %v337
        %s341 = sand.u32 %s106, 1
        %s342 = sand.u32 %s106, 1
        %s343 = smul.addr %s342, 24
        %s344 = scalar_lea.vmem [#allocation2], %s343
        // Predicated region
        $region33: #{resblock_forward.3} parent=31 // pred_check
          %p345 = pneg %p116
        $region34: #{resblock_forward.3} parent=31 // pred_check_branch
          %347 = sbr.rel (%p345) target = $region36
        $region35: #{resblock_forward.3} parent=31 // pred_region
          %s348 = smul.u32 3, %s19
          %s349 = ssub.s32 8, %s348
          %p350 = scmp.lt.s32.totalorder %s349, 3
          %s351 = scalar_select %p350, %s349, 3
          %s352 = smul.u32 128, %s351
          %p353 = scmp.ne.s32.totalorder 0, %s352
          %s354 = smul.addr %s18, 8
          %s355 = sadd.s32 %s348, %s354
          %s356 = smul.addr %s355, 8
          %s357 = scalar_lea.vmem %s3, %s356
          // Predicated region
          $region37: #{resblock_forward.3} parent=35 // pred_check
            %p358 = pneg %p353
          $region38: #{resblock_forward.3} parent=35 // pred_check_branch
            %360 = sbr.rel (%p358) target = $region40
          $region39: #{resblock_forward.3} parent=35 // pred_region
            // Predicated region
            $region41: #{resblock_forward.3} parent=39 // pred_check
              _
            $region42: #{resblock_forward.3} parent=39 // pred_check_branch
              %362 = sbr.rel (0) target = $region44
            $region43: #{resblock_forward.3} parent=39 // pred_region
              // Predicated region
              $region63: #{resblock_forward.3} parent=43 // pred_check
                _
              $region64: #{resblock_forward.3} parent=43 // pred_check_branch
                %416 = sbr.rel (0) target = $region66
              $region65: #{resblock_forward.3} parent=43 // pred_region
                %s417 = sdiv.u32.pop %s351, 3
                %s418 = srem.u32.pop %s351, 3
                // While loop
                $region67: #{resblock_forward.3} parent=65 // loop_pre_header
                  _
                $region68: #{resblock_forward.3} parent=65 // loop_header
                  %s420 = sphi 0, %s422
                  %p421 = scmp.ge.s32.totalorder %s420, %s417
                  %s425 = sphi 0, %s436
                  %s426 = sphi %s344, %s439
                  %s427 = sphi %s357, %s440
                $region69: #{resblock_forward.3} parent=65 // loop_header_branch
                  %424 = sbr.rel (%p421) target = $region73
                $region70: #{resblock_forward.3} parent=65 // loop_body
                  %v428 = vld [vmem:[%s426] sm:$0xff]
                  %429 = vst [vmem:[%s427] sm:$0xff] %v428
                  %v430 = vld [vmem:[%s426 + $0x8] sm:$0xff]
                  %431 = vst [vmem:[%s427 + $0x8] sm:$0xff] %v430
                  %v432 = vld [vmem:[%s426 + $0x10] sm:$0xff]
                  %433 = vst [vmem:[%s427 + $0x10] sm:$0xff] %v432
                  %s434 = sadd.s32 1, %s425
                  %p435 = scmp.ge.s32.totalorder %s434, %s417
                  %s436 = scalar_select %p435, 0, %s434
                  %s437 = smul.u32 %s436, 24
                  %s438 = smul.u32 %s436, 24
                  %s439 = scalar_lea.vmem %s344, %s437 [#allocation2]
                  %s440 = scalar_lea.vmem %s357, %s438
                $region71: #{resblock_forward.3} parent=65 // loop_footer
                  %s422 = sadd.s32 %s420, 1
                $region72: #{resblock_forward.3} parent=65 // loop_footer_branch
                  %419 = sbr.rel target = $region68
                $region73: #{resblock_forward.3} parent=65 // loop_exit
                  _
                %s441 = sdiv.u32.pop %s351, 3
                %s442 = srem.u32.pop %s351, 3
                %s443 = smul.u32 %s441, 3
                %s444 = smul.u32 8, %s443
                %s445 = scalar_lea.vmem %s344, %s444 [#allocation2]
                %s446 = smul.u32 8, %s443
                %s447 = scalar_lea.vmem %s357, %s446
                // While loop
                $region74: #{resblock_forward.3} parent=65 // loop_pre_header
                  _
                $region75: #{resblock_forward.3} parent=65 // loop_header
                  %s449 = sphi 0, %s451
                  %p450 = scmp.ge.s32.totalorder %s449, %s442
                  %s454 = sphi 0, %s461
                  %s455 = sphi %s445, %s464
                  %s456 = sphi %s447, %s465
                $region76: #{resblock_forward.3} parent=65 // loop_header_branch
                  %453 = sbr.rel (%p450) target = $region80
                $region77: #{resblock_forward.3} parent=65 // loop_body
                  %v457 = vld [vmem:[%s455] sm:$0xff]
                  %458 = vst [vmem:[%s456] sm:$0xff] %v457
                  %s459 = sadd.s32 1, %s454
                  %p460 = scmp.ge.s32.totalorder %s459, %s442
                  %s461 = scalar_select %p460, 0, %s459
                  %s462 = smul.u32 %s461, 8
                  %s463 = smul.u32 %s461, 8
                  %s464 = scalar_lea.vmem %s445, %s462 [#allocation2]
                  %s465 = scalar_lea.vmem %s447, %s463
                $region78: #{resblock_forward.3} parent=65 // loop_footer
                  %s451 = sadd.s32 %s449, 1
                $region79: #{resblock_forward.3} parent=65 // loop_footer_branch
                  %448 = sbr.rel target = $region75
                $region80: #{resblock_forward.3} parent=65 // loop_exit
                  _
              $region66: #{resblock_forward.3} parent=43 // pred_fallthru
                _
              // Predicated region
              $region81: #{resblock_forward.3} parent=43 // pred_check
                _
              $region82: #{resblock_forward.3} parent=43 // pred_check_branch
                %467 = sbr.rel target = $region84
              $region83: #{resblock_forward.3} parent=43 // pred_region
                _
              $region84: #{resblock_forward.3} parent=43 // pred_fallthru
                _
            $region44: #{resblock_forward.3} parent=39 // pred_fallthru
              _
            // Predicated region
            $region45: #{resblock_forward.3} parent=39 // pred_check
              _
            $region46: #{resblock_forward.3} parent=39 // pred_check_branch
              %364 = sbr.rel target = $region48
            $region47: #{resblock_forward.3} parent=39 // pred_region
              %s366 = sdiv.u32.pop %s351, 3
              %s367 = srem.u32.pop %s351, 3
              // While loop
              $region49: #{resblock_forward.3} parent=47 // loop_pre_header
                _
              $region50: #{resblock_forward.3} parent=47 // loop_header
                %s369 = sphi 0, %s371
                %p370 = scmp.ge.s32.totalorder %s369, %s366
                %s374 = sphi 0, %s385
                %s375 = sphi %s344, %s388
                %s376 = sphi %s357, %s389
              $region51: #{resblock_forward.3} parent=47 // loop_header_branch
                %373 = sbr.rel (%p370) target = $region55
              $region52: #{resblock_forward.3} parent=47 // loop_body
                %v377 = vld [vmem:[%s375] sm:$0xff]
                %378 = vst [vmem:[%s376] sm:$0xff] %v377
                %v379 = vld [vmem:[%s375 + $0x8] sm:$0xff]
                %380 = vst [vmem:[%s376 + $0x8] sm:$0xff] %v379
                %v381 = vld [vmem:[%s375 + $0x10] sm:$0xff]
                %382 = vst [vmem:[%s376 + $0x10] sm:$0xff] %v381
                %s383 = sadd.s32 1, %s374
                %p384 = scmp.ge.s32.totalorder %s383, %s366
                %s385 = scalar_select %p384, 0, %s383
                %s386 = smul.u32 %s385, 24
                %s387 = smul.u32 %s385, 24
                %s388 = scalar_lea.vmem %s344, %s386 [#allocation2]
                %s389 = scalar_lea.vmem %s357, %s387
              $region53: #{resblock_forward.3} parent=47 // loop_footer
                %s371 = sadd.s32 %s369, 1
              $region54: #{resblock_forward.3} parent=47 // loop_footer_branch
                %368 = sbr.rel target = $region50
              $region55: #{resblock_forward.3} parent=47 // loop_exit
                _
              %s390 = sdiv.u32.pop %s351, 3
              %s391 = srem.u32.pop %s351, 3
              %s392 = smul.u32 %s390, 3
              %s393 = smul.u32 8, %s392
              %s394 = scalar_lea.vmem %s344, %s393 [#allocation2]
              %s395 = smul.u32 8, %s392
              %s396 = scalar_lea.vmem %s357, %s395
              // While loop
              $region56: #{resblock_forward.3} parent=47 // loop_pre_header
                _
              $region57: #{resblock_forward.3} parent=47 // loop_header
                %s398 = sphi 0, %s400
                %p399 = scmp.ge.s32.totalorder %s398, %s391
                %s403 = sphi 0, %s410
                %s404 = sphi %s394, %s413
                %s405 = sphi %s396, %s414
              $region58: #{resblock_forward.3} parent=47 // loop_header_branch
                %402 = sbr.rel (%p399) target = $region62
              $region59: #{resblock_forward.3} parent=47 // loop_body
                %v406 = vld [vmem:[%s404] sm:$0xff]
                %407 = vst [vmem:[%s405] sm:$0xff] %v406
                %s408 = sadd.s32 1, %s403
                %p409 = scmp.ge.s32.totalorder %s408, %s391
                %s410 = scalar_select %p409, 0, %s408
                %s411 = smul.u32 %s410, 8
                %s412 = smul.u32 %s410, 8
                %s413 = scalar_lea.vmem %s394, %s411 [#allocation2]
                %s414 = scalar_lea.vmem %s396, %s412
              $region60: #{resblock_forward.3} parent=47 // loop_footer
                %s400 = sadd.s32 %s398, 1
              $region61: #{resblock_forward.3} parent=47 // loop_footer_branch
                %397 = sbr.rel target = $region57
              $region62: #{resblock_forward.3} parent=47 // loop_exit
                _
            $region48: #{resblock_forward.3} parent=39 // pred_fallthru
              _
          $region40: #{resblock_forward.3} parent=35 // pred_fallthru
            _
          %468 = vnop
        $region36: #{resblock_forward.3} parent=31 // pred_fallthru
          _
      $region32: #{resblock_forward.3} parent=5 // pred_fallthru
        _
      %p469 = scmp.le.s32.totalorder 2, %s9
      // Predicated region
      $region85: #{resblock_forward.3} parent=5 // pred_check
        %p470 = pneg %p469
      $region86: #{resblock_forward.3} parent=5 // pred_check_branch
        %472 = sbr.rel (%p470) target = $region88
      $region87: #{resblock_forward.3} parent=5 // pred_region
        %s473 = ssub.s32 %s9, 2
        // Predicated region
        $region89: #{resblock_forward.3} parent=87 // pred_check
          %p474 = pneg %p122
        $region90: #{resblock_forward.3} parent=87 // pred_check_branch
          %476 = sbr.rel (%p474) target = $region92
        $region91: #{resblock_forward.3} parent=87 // pred_region
          %s477 = sand.u32 %s107, 1
          %s478 = sand.u32 %s107, 1
          %s479 = smul.addr %s478, 24
          %s480 = scalar_lea.vmem [#allocation2], %s479
        $region92: #{resblock_forward.3} parent=87 // pred_fallthru
          _
      $region88: #{resblock_forward.3} parent=5 // pred_fallthru
        _
    $region6: #{resblock_forward.3} parent=1 // loop_footer
      %s13 = sadd.s32 1, %s9
    $region7: #{resblock_forward.3} parent=1 // loop_footer_branch
      %8 = sbr.rel target = $region3
    $region8: #{resblock_forward.3} parent=1 // loop_exit
      _

// kernel: resblock_forward.4
$region0: #{resblock_forward.4}
  #allocation0 [shape = 'u32[]', space=smem, size = 0x4, offset = 0x4, fixed_abs, tag = 'smem constant byte address 0x4 - core index']
  #allocation1 [shape = 'u32[144,128]{1,0:T(1,128)}', space=vmem, size = 0x12000, scoped, tag = 'internal scratch']
  %s0 = inlined_call_operand.vmem [shape: f32[2,8,8,128], index: 0, kind: input, shape index: {}, may-alias: {0,1,2}]
  %s1 = inlined_call_operand.vmem [shape: f32[2,8,8,128], index: 1, kind: input, shape index: {}, may-alias: {0,1,2}]
  %s2 = inlined_call_operand.vmem [shape: f32[2,8,8,128], index: 2, kind: input, shape index: {}, may-alias: {0,1,2}]
  %s3 = inlined_call_operand.vmem [shape: f32[128,128], index: 3, kind: input, shape index: {}]
  %s4 = inlined_call_operand.vmem [shape: f32[1,128], index: 4, kind: input, shape index: {}]
  %s5 = inlined_call_operand.vmem [shape: f32[3,384,128], index: 5, kind: input, shape index: {}]
  %s6 = inlined_call_operand.vmem [shape: f32[1,128], index: 6, kind: input, shape index: {}]
  %s7 = inlined_call_operand.vmem [shape: f32[2,8,8,128], index: 7, kind: output, shape index: {}]
  %s8 = sld [smem:[#allocation0]]
  $region109: #{resblock_forward.4} parent=0
    _
  %s10 = ssub.s32 1, %s8
  %s11 = scalar_select 0, %s10, %s8
  $region1: #{resblock_forward.4} parent=0
    #allocation2 [shape = 'u8[24576]{0}', space=vmem, size = 0x6000, scoped, tag = 'output window, operand 0']
    loop: start=0, step=1, limit=8
    $region2: #{resblock_forward.4} parent=1 // loop_pre_header
      _
    $region3: #{resblock_forward.4} parent=1 // loop_header
      %s13 = sphi 0, %s17
      %p14 = scmp.ge.s32.totalorder %s13, 8
      %s20 = sphi 0, %s32
      %s21 = sphi 0, %s28
      %s22 = sphi 0, %s20
      %s23 = sphi 0, %s21
      %s24 = sphi 0, %s22
      %s25 = sphi 0, %s23
      %s37 = sphi 0, %s39
      %s40 = sphi 0, %s37
      %s41 = sphi 0, %s40
      %s57 = sphi 0, %s41
      %s73 = sphi 0, %s75
      %s76 = sphi 0, %s73
      %s77 = sphi 0, %s76
      %s93 = sphi 0, %s77
      %s109 = sphi 0, %s111
      %s112 = sphi 0, %s109
      %s113 = sphi 0, %s112
      %s129 = sphi 0, %s113
      %s133 = sphi 0, %s133
      %s135 = sphi 0, %s133
      %s136 = sphi 0, %s135
      %s150 = sphi 0, %s136
      %s154 = sphi 0, %s154
      %s156 = sphi 0, %s154
      %s157 = sphi 0, %s156
      %s171 = sphi 0, %s157
      %s175 = sphi 0, %s175
      %s177 = sphi 0, %s175
      %s178 = sphi 0, %s177
      %s192 = sphi 0, %s178
      %s196 = sphi 0, %s196
      %s198 = sphi 0, %s196
      %s199 = sphi 0, %s198
      %s213 = sphi 0, %s199
      %s221 = sphi 0, %s223
      %s224 = sphi 0, %s221
      %s225 = sphi 0, %s224
      %s241 = sphi 0, %s225
    $region4: #{resblock_forward.4} parent=1 // loop_header_branch
      %16 = sbr.rel (%p14) target = $region8
    $region5: #{resblock_forward.4} parent=1 // loop_body
      %s18 = ssub.s32 %s13, 1
      %s19 = ssub.s32 %s13, 2
      %s26 = sadd.s32 1, %s21
      %p27 = scmp.ge.s32.totalorder %s26, 3
      %s28 = scalar_select %p27, 0, %s26
      %s29 = sadd.s32 1, %s20
      %s30 = scalar_select %p27, %s29, %s20
      %p31 = scmp.ge.s32.totalorder %s30, 2
      %s32 = scalar_select %p31, 0, %s30
      %s33 = ssub.s32 %s20, %s32
      %s34 = ssub.s32 %s21, %s28
      %s35 = sor.u32 %s33, %s34
      %p36 = scmp.eq.s32.totalorder %s35, 0
      %s38 = sadd.s32 %s37, 1
      %s39 = scalar_select %p36, %s37, %s38
      %p42 = pneg %p36
      %p43 = scmp.eq.s32.totalorder %s13, 5
      %p44 = por %p42, %p43
      %p45 = scmp.ne.s32.totalorder %s37, %s40
      %p46 = scmp.eq.s32.totalorder %s13, 0
      %p47 = por %p45, %p46
      %p48 = scmp.ne.s32.totalorder %s37, %s40
      %p49 = scmp.eq.s32.totalorder %s18, 5
      %p50 = por %p48, %p49
      %p51 = scmp.ne.s32.totalorder %s40, %s41
      %p52 = scmp.eq.s32.totalorder %s18, 0
      %p53 = por %p51, %p52
      %p54 = scmp.ne.s32.totalorder %s40, %s41
      %p55 = scmp.eq.s32.totalorder %s19, 5
      %p56 = por %p54, %p55
      %p58 = scmp.ne.s32.totalorder %s41, %s57
      %p59 = scmp.eq.s32.totalorder %s19, 0
      %p60 = por %p58, %p59
      %s61 = smul.u32 %s21, 3
      %s62 = ssub.s32 %s61, 1
      %p63 = scmp.gt.s32.totalorder %s62, 0
      %s64 = scalar_select %p63, %s62, 0
      %s65 = smul.u32 %s28, 3
      %s66 = ssub.s32 %s65, 1
      %p67 = scmp.gt.s32.totalorder %s66, 0
      %s68 = scalar_select %p67, %s66, 0
      %s69 = ssub.s32 %s20, %s32
      %s70 = ssub.s32 %s64, %s68
      %s71 = sor.u32 %s69, %s70
      %p72 = scmp.eq.s32.totalorder %s71, 0
      %s74 = sadd.s32 %s73, 1
      %s75 = scalar_select %p72, %s73, %s74
      %p78 = pneg %p72
      %p79 = scmp.eq.s32.totalorder %s13, 5
      %p80 = por %p78, %p79
      %p81 = scmp.ne.s32.totalorder %s73, %s76
      %p82 = scmp.eq.s32.totalorder %s13, 0
      %p83 = por %p81, %p82
      %p84 = scmp.ne.s32.totalorder %s73, %s76
      %p85 = scmp.eq.s32.totalorder %s18, 5
      %p86 = por %p84, %p85
      %p87 = scmp.ne.s32.totalorder %s76, %s77
      %p88 = scmp.eq.s32.totalorder %s18, 0
      %p89 = por %p87, %p88
      %p90 = scmp.ne.s32.totalorder %s76, %s77
      %p91 = scmp.eq.s32.totalorder %s19, 5
      %p92 = por %p90, %p91
      %p94 = scmp.ne.s32.totalorder %s77, %s93
      %p95 = scmp.eq.s32.totalorder %s19, 0
      %p96 = por %p94, %p95
      %s97 = sadd.s32 %s21, 1
      %s98 = smul.u32 %s97, 3
      %p99 = scmp.lt.s32.totalorder %s98, 7
      %s100 = scalar_select %p99, %s98, 7
      %s101 = sadd.s32 %s28, 1
      %s102 = smul.u32 %s101, 3
      %p103 = scmp.lt.s32.totalorder %s102, 7
      %s104 = scalar_select %p103, %s102, 7
      %s105 = ssub.s32 %s20, %s32
      %s106 = ssub.s32 %s100, %s104
      %s107 = sor.u32 %s105, %s106
      %p108 = scmp.eq.s32.totalorder %s107, 0
      %s110 = sadd.s32 %s109, 1
      %s111 = scalar_select %p108, %s109, %s110
      %p114 = pneg %p108
      %p115 = scmp.eq.s32.totalorder %s13, 5
      %p116 = por %p114, %p115
      %p117 = scmp.ne.s32.totalorder %s109, %s112
      %p118 = scmp.eq.s32.totalorder %s13, 0
      %p119 = por %p117, %p118
      %p120 = scmp.ne.s32.totalorder %s109, %s112
      %p121 = scmp.eq.s32.totalorder %s18, 5
      %p122 = por %p120, %p121
      %p123 = scmp.ne.s32.totalorder %s112, %s113
      %p124 = scmp.eq.s32.totalorder %s18, 0
      %p125 = por %p123, %p124
      %p126 = scmp.ne.s32.totalorder %s112, %s113
      %p127 = scmp.eq.s32.totalorder %s19, 5
      %p128 = por %p126, %p127
      %p130 = scmp.ne.s32.totalorder %s113, %s129
      %p131 = scmp.eq.s32.totalorder %s19, 0
      %p132 = por %p130, %p131
      %s134 = sadd.s32 %s133, 1
      %p137 = scmp.eq.s32.totalorder %s13, 5
      %p138 = scmp.ne.s32.totalorder %s133, %s135
      %p139 = scmp.eq.s32.totalorder %s13, 0
      %p140 = por %p138, %p139
      %p141 = scmp.ne.s32.totalorder %s133, %s135
      %p142 = scmp.eq.s32.totalorder %s18, 5
      %p143 = por %p141, %p142
      %p144 = scmp.ne.s32.totalorder %s135, %s136
      %p145 = scmp.eq.s32.totalorder %s18, 0
      %p146 = por %p144, %p145
      %p147 = scmp.ne.s32.totalorder %s135, %s136
      %p148 = scmp.eq.s32.totalorder %s19, 5
      %p149 = por %p147, %p148
      %p151 = scmp.ne.s32.totalorder %s136, %s150
      %p152 = scmp.eq.s32.totalorder %s19, 0
      %p153 = por %p151, %p152
      %s155 = sadd.s32 %s154, 1
      %p158 = scmp.eq.s32.totalorder %s13, 5
      %p159 = scmp.ne.s32.totalorder %s154, %s156
      %p160 = scmp.eq.s32.totalorder %s13, 0
      %p161 = por %p159, %p160
      %p162 = scmp.ne.s32.totalorder %s154, %s156
      %p163 = scmp.eq.s32.totalorder %s18, 5
      %p164 = por %p162, %p163
      %p165 = scmp.ne.s32.totalorder %s156, %s157
      %p166 = scmp.eq.s32.totalorder %s18, 0
      %p167 = por %p165, %p166
      %p168 = scmp.ne.s32.totalorder %s156, %s157
      %p169 = scmp.eq.s32.totalorder %s19, 5
      %p170 = por %p168, %p169
      %p172 = scmp.ne.s32.totalorder %s157, %s171
      %p173 = scmp.eq.s32.totalorder %s19, 0
      %p174 = por %p172, %p173
      %s176 = sadd.s32 %s175, 1
      %p179 = scmp.eq.s32.totalorder %s13, 5
      %p180 = scmp.ne.s32.totalorder %s175, %s177
      %p181 = scmp.eq.s32.totalorder %s13, 0
      %p182 = por %p180, %p181
      %p183 = scmp.ne.s32.totalorder %s175, %s177
      %p184 = scmp.eq.s32.totalorder %s18, 5
      %p185 = por %p183, %p184
      %p186 = scmp.ne.s32.totalorder %s177, %s178
      %p187 = scmp.eq.s32.totalorder %s18, 0
      %p188 = por %p186, %p187
      %p189 = scmp.ne.s32.totalorder %s177, %s178
      %p190 = scmp.eq.s32.totalorder %s19, 5
      %p191 = por %p189, %p190
      %p193 = scmp.ne.s32.totalorder %s178, %s192
      %p194 = scmp.eq.s32.totalorder %s19, 0
      %p195 = por %p193, %p194
      %s197 = sadd.s32 %s196, 1
      %p200 = scmp.eq.s32.totalorder %s13, 5
      %p201 = scmp.ne.s32.totalorder %s196, %s198
      %p202 = scmp.eq.s32.totalorder %s13, 0
      %p203 = por %p201, %p202
      %p204 = scmp.ne.s32.totalorder %s196, %s198
      %p205 = scmp.eq.s32.totalorder %s18, 5
      %p206 = por %p204, %p205
      %p207 = scmp.ne.s32.totalorder %s198, %s199
      %p208 = scmp.eq.s32.totalorder %s18, 0
      %p209 = por %p207, %p208
      %p210 = scmp.ne.s32.totalorder %s198, %s199
      %p211 = scmp.eq.s32.totalorder %s19, 5
      %p212 = por %p210, %p211
      %p214 = scmp.ne.s32.totalorder %s199, %s213
      %p215 = scmp.eq.s32.totalorder %s19, 0
      %p216 = por %p214, %p215
      %s217 = ssub.s32 %s20, %s32
      %s218 = ssub.s32 %s21, %s28
      %s219 = sor.u32 %s217, %s218
      %p220 = scmp.eq.s32.totalorder %s219, 0
      %s222 = sadd.s32 %s221, 1
      %s223 = scalar_select %p220, %s221, %s222
      %p226 = pneg %p220
      %p227 = scmp.eq.s32.totalorder %s13, 5
      %p228 = por %p226, %p227
      %p229 = scmp.ne.s32.totalorder %s221, %s224
      %p230 = scmp.eq.s32.totalorder %s13, 0
      %p231 = por %p229, %p230
      %p232 = scmp.ne.s32.totalorder %s221, %s224
      %p233 = scmp.eq.s32.totalorder %s18, 5
      %p234 = por %p232, %p233
      %p235 = scmp.ne.s32.totalorder %s224, %s225
      %p236 = scmp.eq.s32.totalorder %s18, 0
      %p237 = por %p235, %p236
      %p238 = scmp.ne.s32.totalorder %s224, %s225
      %p239 = scmp.eq.s32.totalorder %s19, 5
      %p240 = por %p238, %p239
      %p242 = scmp.ne.s32.totalorder %s225, %s241
      %p243 = scmp.eq.s32.totalorder %s19, 0
      %p244 = por %p242, %p243
      %p245 = scmp.le.s32.totalorder 1, %s13
      %p246 = scmp.lt.s32.totalorder %s13, 7
      %p247 = pnand %p245, %p246
      %p248 = pneg %p247
      // Predicated region
      $region9: #{resblock_forward.4} parent=5 // pred_check
        _
      $region10: #{resblock_forward.4} parent=5 // pred_check_branch
        %250 = sbr.rel (%p247) target = $region12
      $region11: #{resblock_forward.4} parent=5 // pred_region
        %s251 = ssub.s32 %s13, 1
        // Predicated region
        $region13: #{resblock_forward.4} parent=11 // pred_check
          %p252 = pneg %p146
        $region14: #{resblock_forward.4} parent=11 // pred_check_branch
          %254 = sbr.rel (%p252) target = $region16
        $region15: #{resblock_forward.4} parent=11 // pred_region
          _
        $region16: #{resblock_forward.4} parent=11 // pred_fallthru
          _
        // Predicated region
        $region17: #{resblock_forward.4} parent=11 // pred_check
          %p255 = pneg %p167
        $region18: #{resblock_forward.4} parent=11 // pred_check_branch
          %257 = sbr.rel (%p255) target = $region20
        $region19: #{resblock_forward.4} parent=11 // pred_region
          _
        $region20: #{resblock_forward.4} parent=11 // pred_fallthru
          _
        // Predicated region
        $region21: #{resblock_forward.4} parent=11 // pred_check
          %p258 = pneg %p188
        $region22: #{resblock_forward.4} parent=11 // pred_check_branch
          %260 = sbr.rel (%p258) target = $region24
        $region23: #{resblock_forward.4} parent=11 // pred_region
          _
        $region24: #{resblock_forward.4} parent=11 // pred_fallthru
          _
        // Predicated region
        $region25: #{resblock_forward.4} parent=11 // pred_check
          %p261 = pneg %p209
        $region26: #{resblock_forward.4} parent=11 // pred_check_branch
          %263 = sbr.rel (%p261) target = $region28
        $region27: #{resblock_forward.4} parent=11 // pred_region
          _
        $region28: #{resblock_forward.4} parent=11 // pred_fallthru
          _
      $region12: #{resblock_forward.4} parent=5 // pred_fallthru
        _
      %p264 = scmp.lt.s32.totalorder %s13, 6
      // Predicated region
      $region29: #{resblock_forward.4} parent=5 // pred_check
        %p265 = pneg %p264
      $region30: #{resblock_forward.4} parent=5 // pred_check_branch
        %267 = sbr.rel (%p265) target = $region32
      $region31: #{resblock_forward.4} parent=5 // pred_region
        // Predicated region
        $region33: #{resblock_forward.4} parent=31 // pred_check
          %p268 = pneg %p47
        $region34: #{resblock_forward.4} parent=31 // pred_check_branch
          %270 = sbr.rel (%p268) target = $region36
        $region35: #{resblock_forward.4} parent=31 // pred_region
          %s271 = smul.u32 3, %s21
          %s272 = ssub.s32 8, %s271
          %p273 = scmp.lt.s32.totalorder %s272, 3
          %s274 = scalar_select %p273, %s272, 3
          %s275 = smul.u32 128, %s274
          %p276 = scmp.lt.s32.totalorder %s20, 1
          %s277 = scalar_select %p276, %s20, 1
          %p278 = scmp.lt.s32.totalorder %s271, 7
          %s279 = scalar_select %p278, %s271, 7
          %s280 = smul.addr %s277, 8
          %s281 = sadd.s32 %s279, %s280
          %s282 = smul.addr %s281, 8
          %s283 = scalar_lea.vmem %s0, %s282
          %s284 = smul.u32 3, %s21
          %s285 = ssub.s32 8, %s284
          %p286 = scmp.lt.s32.totalorder %s285, 3
          %s287 = scalar_select %p286, %s285, 3
          %s288 = smul.u32 128, %s287
        $region36: #{resblock_forward.4} parent=31 // pred_fallthru
          _
        // Predicated region
        $region37: #{resblock_forward.4} parent=31 // pred_check
          %p289 = pneg %p83
        $region38: #{resblock_forward.4} parent=31 // pred_check_branch
          %291 = sbr.rel (%p289) target = $region40
        $region39: #{resblock_forward.4} parent=31 // pred_region
          %s292 = smul.u32 %s21, 3
          %s293 = ssub.s32 %s292, 1
          %p294 = scmp.gt.s32.totalorder %s293, 0
          %s295 = scalar_select %p294, %s293, 0
          %p296 = scmp.lt.s32.totalorder %s20, 1
          %s297 = scalar_select %p296, %s20, 1
          %p298 = scmp.lt.s32.totalorder %s295, 7
          %s299 = scalar_select %p298, %s295, 7
          %s300 = smul.addr %s297, 8
          %s301 = sadd.s32 %s299, %s300
          %s302 = smul.addr %s301, 8
          %s303 = scalar_lea.vmem %s1, %s302
          %s304 = smul.u32 %s21, 3
          %s305 = ssub.s32 %s304, 1
          %p306 = scmp.gt.s32.totalorder %s305, 0
          %s307 = scalar_select %p306, %s305, 0
        $region40: #{resblock_forward.4} parent=31 // pred_fallthru
          _
        // Predicated region
        $region41: #{resblock_forward.4} parent=31 // pred_check
          %p308 = pneg %p119
        $region42: #{resblock_forward.4} parent=31 // pred_check_branch
          %310 = sbr.rel (%p308) target = $region44
        $region43: #{resblock_forward.4} parent=31 // pred_region
          %s311 = sadd.s32 %s21, 1
          %s312 = smul.u32 %s311, 3
          %p313 = scmp.lt.s32.totalorder %s312, 7
          %s314 = scalar_select %p313, %s312, 7
          %p315 = scmp.lt.s32.totalorder %s20, 1
          %s316 = scalar_select %p315, %s20, 1
          %p317 = scmp.lt.s32.totalorder %s314, 7
          %s318 = scalar_select %p317, %s314, 7
          %s319 = smul.addr %s316, 8
          %s320 = sadd.s32 %s318, %s319
          %s321 = smul.addr %s320, 8
          %s322 = scalar_lea.vmem %s2, %s321
          %s323 = sadd.s32 %s21, 1
          %s324 = smul.u32 %s323, 3
          %p325 = scmp.lt.s32.totalorder %s324, 7
          %s326 = scalar_select %p325, %s324, 7
        $region44: #{resblock_forward.4} parent=31 // pred_fallthru
          _
      $region32: #{resblock_forward.4} parent=5 // pred_fallthru
        _
      %p327 = scmp.le.s32.totalorder 1, %s13
      %p328 = scmp.lt.s32.totalorder %s13, 7
      %p329 = pnand %p327, %p328
      %p330 = pneg %p329
      // Predicated region
      $region45: #{resblock_forward.4} parent=5 // pred_check
        _
      $region46: #{resblock_forward.4} parent=5 // pred_check_branch
        %332 = sbr.rel (%p329) target = $region48
      $region47: #{resblock_forward.4} parent=5 // pred_region
        %s333 = ssub.s32 %s13, 1
        %s334 = smul.u32 3, %s23
        %s335 = ssub.s32 8, %s334
        %p336 = scmp.lt.s32.totalorder %s335, 3
        %s337 = scalar_select %p336, %s335, 3
        %s338 = smul.u32 128, %s337
        %p339 = scmp.lt.s32.totalorder %s22, 1
        %s340 = scalar_select %p339, %s22, 1
        %p341 = scmp.lt.s32.totalorder %s334, 7
        %s342 = scalar_select %p341, %s334, 7
        %s343 = smul.addr %s340, 8
        %s344 = sadd.s32 %s342, %s343
        %s345 = smul.addr %s344, 8
        %s346 = scalar_lea.vmem %s0, %s345
        %p347 = pneg %p53
        %p348 = pneg %p50
        %s349 = smul.u32 %s23, 3
        %s350 = ssub.s32 %s349, 1
        %p351 = scmp.gt.s32.totalorder %s350, 0
        %s352 = scalar_select %p351, %s350, 0
        %p353 = scmp.lt.s32.totalorder %s22, 1
        %s354 = scalar_select %p353, %s22, 1
        %p355 = scmp.lt.s32.totalorder %s352, 7
        %s356 = scalar_select %p355, %s352, 7
        %s357 = smul.addr %s354, 8
        %s358 = sadd.s32 %s356, %s357
        %s359 = smul.addr %s358, 8
        %s360 = scalar_lea.vmem %s1, %s359
        %p361 = pneg %p89
        %p362 = pneg %p86
        %s363 = sadd.s32 %s23, 1
        %s364 = smul.u32 %s363, 3
        %p365 = scmp.lt.s32.totalorder %s364, 7
        %s366 = scalar_select %p365, %s364, 7
        %p367 = scmp.lt.s32.totalorder %s22, 1
        %s368 = scalar_select %p367, %s22, 1
        %p369 = scmp.lt.s32.totalorder %s366, 7
        %s370 = scalar_select %p369, %s366, 7
        %s371 = smul.addr %s368, 8
        %s372 = sadd.s32 %s370, %s371
        %s373 = smul.addr %s372, 8
        %s374 = scalar_lea.vmem %s2, %s373
        %p375 = pneg %p125
        %p376 = pneg %p122
        %p377 = pneg %p146
        %p378 = pneg %p143
        %p379 = pneg %p167
        %p380 = pneg %p164
        %p381 = pneg %p188
        %p382 = pneg %p185
        %p383 = pneg %p209
        %p384 = pneg %p206
        %p385 = pneg %p237
        %p386 = pneg %p234
        %s387 = sand.u32 %s224, 1
        %s388 = sand.u32 %s224, 1
        %s389 = smul.addr %s388, 24
        %s390 = scalar_lea.vmem [#allocation2], %s389
        %s391 = smul.u32 3, %s23
        %s392 = ssub.s32 8, %s391
        %p393 = scmp.lt.s32.totalorder %s392, 3
        %s394 = scalar_select %p393, %s392, 3
        %s395 = smul.u32 128, %s394
        %p396 = scmp.lt.s32.totalorder %s22, 1
        %s397 = scalar_select %p396, %s22, 1
        %p398 = scmp.lt.s32.totalorder %s391, 7
        %s399 = scalar_select %p398, %s391, 7
        %s400 = smul.addr %s397, 8
        %s401 = sadd.s32 %s399, %s400
        %s402 = smul.addr %s401, 8
        %s403 = scalar_lea.vmem %s0, %s402
        %s404 = smul.u32 3, %s23
        %s405 = ssub.s32 8, %s404
        %p406 = scmp.lt.s32.totalorder %s405, 3
        %s407 = scalar_select %p406, %s405, 3
        %s408 = smul.u32 128, %s407
        %s409 = smul.u32 %s23, 3
        %s410 = ssub.s32 %s409, 1
        %p411 = scmp.gt.s32.totalorder %s410, 0
        %s412 = scalar_select %p411, %s410, 0
        %p413 = scmp.lt.s32.totalorder %s22, 1
        %s414 = scalar_select %p413, %s22, 1
        %p415 = scmp.lt.s32.totalorder %s412, 7
        %s416 = scalar_select %p415, %s412, 7
        %s417 = smul.addr %s414, 8
        %s418 = sadd.s32 %s416, %s417
        %s419 = smul.addr %s418, 8
        %s420 = scalar_lea.vmem %s1, %s419
        %s421 = smul.u32 %s23, 3
        %s422 = ssub.s32 %s421, 1
        %p423 = scmp.gt.s32.totalorder %s422, 0
        %s424 = scalar_select %p423, %s422, 0
        %s425 = sadd.s32 %s23, 1
        %s426 = smul.u32 %s425, 3
        %p427 = scmp.lt.s32.totalorder %s426, 7
        %s428 = scalar_select %p427, %s426, 7
        %p429 = scmp.lt.s32.totalorder %s22, 1
        %s430 = scalar_select %p429, %s22, 1
        %p431 = scmp.lt.s32.totalorder %s428, 7
        %s432 = scalar_select %p431, %s428, 7
        %s433 = smul.addr %s430, 8
        %s434 = sadd.s32 %s432, %s433
        %s435 = smul.addr %s434, 8
        %s436 = scalar_lea.vmem %s2, %s435
        %s437 = sadd.s32 %s23, 1
        %s438 = smul.u32 %s437, 3
        %p439 = scmp.lt.s32.totalorder %s438, 7
        %s440 = scalar_select %p439, %s438, 7
        %s441 = smul.u32 3, %s23
        %s442 = ssub.s32 8, %s441
        %p443 = scmp.lt.s32.totalorder %s442, 3
        %s444 = scalar_select %p443, %s442, 3
        %s445 = smul.u32 128, %s444
        %v446 = vld [vmem:[%s420] sm:$0xff]
        %v447 = vld [vmem:[%s403] sm:$0xff]
        %v448 = vld [vmem:[%s403 + $0x8] sm:$0xff]
        %v449 = vld [vmem:[%s403 + $0x10] sm:$0xff]
        %v450 = vld [vmem:[%s436] sm:$0xff]
        %v451 = vld [vmem:[%s3] sm:$0xff]
        %v452 = vld [vmem:[%s3 + $0x8] sm:$0xff]
        %v453 = vld [vmem:[%s3 + $0x10] sm:$0xff]
        %v454 = vld [vmem:[%s3 + $0x18] sm:$0xff]
        %v455 = vld [vmem:[%s3 + $0x20] sm:$0xff]
        %v456 = vld [vmem:[%s3 + $0x28] sm:$0xff]
        %v457 = vld [vmem:[%s3 + $0x30] sm:$0xff]
        %v458 = vld [vmem:[%s3 + $0x38] sm:$0xff]
        %v459 = vld [vmem:[%s3 + $0x40] sm:$0xff]
        %v460 = vld [vmem:[%s3 + $0x48] sm:$0xff]
        %v461 = vld [vmem:[%s3 + $0x50] sm:$0xff]
        %v462 = vld [vmem:[%s3 + $0x58] sm:$0xff]
        %v463 = vld [vmem:[%s3 + $0x60] sm:$0xff]
        %v464 = vld [vmem:[%s3 + $0x68] sm:$0xff]
        %v465 = vld [vmem:[%s3 + $0x70] sm:$0xff]
        %v466 = vld [vmem:[%s3 + $0x78] sm:$0xff]
        %v467 = vld [vmem:[%s4] sm:$0x1]
        %v469 = vlaneseq
        %v470 = vshrl.u32 %v469, 7
        %v471 = vsub.s32 0, %v470
        %v472 = vrot.slane %v467, %v471
        %474 = vmatprep.subr.mxu0 0.0
        %475 = vmatpush1.msra.mxu0 %v451
        %476 = vmatprep.subr.mxu0 0.0
        %477 = vmatpush1.msra.mxu0 %v452
        %478 = vmatprep.subr.mxu0 0.0
        %479 = vmatpush1.msra.mxu0 %v453
        %480 = vmatprep.subr.mxu0 0.0
        %481 = vmatpush1.msra.mxu0 %v454
        %482 = vmatprep.subr.mxu0 0.0
        %483 = vmatpush1.msra.mxu0 %v455
        %484 = vmatprep.subr.mxu0 0.0
        %485 = vmatpush1.msra.mxu0 %v456
        %486 = vmatprep.subr.mxu0 0.0
        %487 = vmatpush1.msra.mxu0 %v457
        %488 = vmatprep.subr.mxu0 0.0
        %489 = vmatpush1.msra.mxu0 %v458
        %490 = vmatprep.subr.mxu0 0.0
        %491 = vmatpush1.msra.mxu0 %v459
        %492 = vmatprep.subr.mxu0 0.0
        %493 = vmatpush1.msra.mxu0 %v460
        %494 = vmatprep.subr.mxu0 0.0
        %495 = vmatpush1.msra.mxu0 %v461
        %496 = vmatprep.subr.mxu0 0.0
        %497 = vmatpush1.msra.mxu0 %v462
        %498 = vmatprep.subr.mxu0 0.0
        %499 = vmatpush1.msra.mxu0 %v463
        %500 = vmatprep.subr.mxu0 0.0
        %501 = vmatpush1.msra.mxu0 %v464
        %502 = vmatprep.subr.mxu0 0.0
        %503 = vmatpush1.msra.mxu0 %v465
        %504 = vmatprep.subr.mxu0 0.0
        %505 = vmatpush1.msra.mxu0 %v466
        %506 = vmatprep.subr.mxu0 0.0
        %507 = vmatpush1.msra.mxu0 0.0
        %508 = vmatprep.subr.mxu0 0.0
        %509 = vmatpush1.msra.mxu0 0.0
        %510 = vmatprep.subr.mxu0 0.0
        %511 = vmatpush1.msra.mxu0 0.0
        %512 = vmatprep.subr.mxu0 0.0
        %513 = vmatpush1.msra.mxu0 0.0
        %514 = vmatprep.subr.mxu0 0.0
        %515 = vmatpush1.msra.mxu0 0.0
        %516 = vmatprep.subr.mxu0 0.0
        %517 = vmatpush1.msra.mxu0 0.0
        %518 = vmatprep.subr.mxu0 0.0
        %519 = vmatpush1.msra.mxu0 0.0
        %520 = vmatprep.subr.mxu0 0.0
        %521 = vmatpush1.msra.mxu0 0.0
        %522 = vmatprep.subr.mxu0 0.0
        %523 = vmatpush1.msra.mxu0 0.0
        %524 = vmatprep.subr.mxu0 0.0
        %525 = vmatpush1.msra.mxu0 0.0
        %526 = vmatprep.subr.mxu0 0.0
        %527 = vmatpush1.msra.mxu0 0.0
        %528 = vmatprep.subr.mxu0 0.0
        %529 = vmatpush1.msra.mxu0 0.0
        %530 = vmatprep.subr.mxu0 0.0
        %531 = vmatpush1.msra.mxu0 0.0
        %532 = vmatprep.subr.mxu0 0.0
        %533 = vmatpush1.msra.mxu0 0.0
        %534 = vmatprep.subr.mxu0 0.0
        %535 = vmatpush1.msra.mxu0 0.0
        %536 = vmatprep.subr.mxu0 0.0
        %537 = vmatpush1.msra.mxu0 0.0
        %538 = vmatprep.mubr.f32.mxu0 0.0
        %539 = vmatmul.mubr.f32.gmra.mrb[0].mxu0 %v446
        %v540 = vpop.f32.mrb[0].mxu0
        %v541 = vadd.f32 %v472, %v540
        %v542 = vpop.f32.mrb[0].mxu0
        %543 = vmatprep.mubr.f32.mxu0 0.0
        %544 = vmatmul.mubr.f32.gmra.mrb[0].mxu0 %v447
        %v545 = vpop.f32.mrb[0].mxu0
        %v546 = vadd.f32 %v472, %v545
        %v547 = vpop.f32.mrb[0].mxu0
        %548 = vmatprep.mubr.f32.mxu0 0.0
        %549 = vmatmul.mubr.f32.gmra.mrb[0].mxu0 %v448
        %v550 = vpop.f32.mrb[0].mxu0
        %v551 = vadd.f32 %v472, %v550
        %v552 = vpop.f32.mrb[0].mxu0
        %553 = vmatprep.mubr.f32.mxu0 0.0
        %554 = vmatmul.mubr.f32.gmra.mrb[0].mxu0 %v449
        %v555 = vpop.f32.mrb[0].mxu0
        %v556 = vadd.f32 %v472, %v555
        %v557 = vpop.f32.mrb[0].mxu0
        %558 = vmatprep.mubr.f32.mxu0 0.0
        %559 = vmatmul.mubr.f32.gmra.mrb[0].mxu0 %v450
        %v560 = vpop.f32.mrb[0].mxu0
        %v561 = vadd.f32 %v472, %v560
        %v562 = vpop.f32.mrb[0].mxu0
        %563 = vdwg.mxu0
        %vm564 = vcmp.gt.f32.partialorder %v541, 0.0
        %vm565 = vcmp.gt.f32.partialorder %v546, 0.0
        %vm566 = vcmp.gt.f32.partialorder %v551, 0.0
        %vm567 = vcmp.gt.f32.partialorder %v556, 0.0
        %vm568 = vcmp.gt.f32.partialorder %v561, 0.0
        %v569 = vmul.f32 %v541, 0.1
        %v570 = vmul.f32 %v546, 0.1
        %v571 = vmul.f32 %v551, 0.1
        %v572 = vmul.f32 %v556, 0.1
        %v573 = vmul.f32 %v561, 0.1
        %v574 = vsel %vm564, %v541, %v569
        %v575 = vsel %vm565, %v546, %v570
        %v576 = vsel %vm566, %v551, %v571
        %v577 = vsel %vm567, %v556, %v572
        %v578 = vsel %vm568, %v561, %v573
        %s579 = smul.u32 %s23, 3
        %v580 = vstv %s579
        %v581 = vadd.s32 %v580, 2
        %v582 = vadd.s32 %v580, 3
        %v583 = vadd.s32 %v580, 4
        %v584 = vsub.s32 %v580, 1
        %v585 = vsub.s32 %v581, 1
        %v586 = vsub.s32 %v582, 1
        %v587 = vsub.s32 %v583, 1
        %vm588 = vcmp.ge.s32.totalorder %v584, 0
        %vm589 = vcmp.ge.s32.totalorder %v580, 0
        %vm590 = vcmp.ge.s32.totalorder %v585, 0
        %vm591 = vcmp.ge.s32.totalorder %v586, 0
        %vm592 = vcmp.ge.s32.totalorder %v587, 0
        %vm593 = vcmp.lt.s32.totalorder %v584, 8
        %vm594 = vcmp.lt.s32.totalorder %v580, 8
        %vm595 = vcmp.lt.s32.totalorder %v585, 8
        %vm596 = vcmp.lt.s32.totalorder %v586, 8
        %vm597 = vcmp.lt.s32.totalorder %v587, 8
        %vm598 = vmand %vm588, %vm593
        %vm599 = vmand %vm589, %vm594
        %vm600 = vmand %vm590, %vm595
        %vm601 = vmand %vm591, %vm596
        %vm602 = vmand %vm592, %vm597
        %v603 = vsel %vm598, 1, 0
        %v604 = vsel %vm599, 1, 0
        %v605 = vsel %vm600, 1, 0
        %v606 = vsel %vm601, 1, 0
        %v607 = vsel %vm602, 1, 0
        %vm608 = vcmp.eq.s32.totalorder %v603, 1
        %vm609 = vcmp.eq.s32.totalorder %v604, 1
        %vm610 = vcmp.eq.s32.totalorder %v605, 1
        %vm611 = vcmp.eq.s32.totalorder %v606, 1
        %vm612 = vcmp.eq.s32.totalorder %v607, 1
        %v613 = vsel %vm608, %v574, 0.0
        %v614 = vsel %vm609, %v575, 0.0
        %v615 = vsel %vm610, %v576, 0.0
        %v616 = vsel %vm611, %v577, 0.0
        %v617 = vsel %vm612, %v578, 0.0
        %v623 = vrot.slane %v613, 7
        %v624 = vrot.slane %v614, 7
        %v625 = vrot.slane %v615, 7
        %v626 = vrot.slane %v616, 7
        %v627 = vrot.slane %v617, 7
        %vm633 = vcmask 1040384
        %v634 = vsel %vm633, 0.0, %v623
        %v635 = vsel %vm633, 0.0, %v624
        %v636 = vsel %vm633, 0.0, %v625
        %v637 = vsel %vm633, 0.0, %v626
        %v638 = vsel %vm633, 0.0, %v627
        %v639 = vrot.slane %v613, 1
        %v640 = vrot.slane %v614, 1
        %v641 = vrot.slane %v615, 1
        %v642 = vrot.slane %v616, 1
        %v643 = vrot.slane %v617, 1
        %vm649 = vcmask 1046528
        %v650 = vsel %vm649, %v639, 0.0
        %v651 = vsel %vm649, %v640, 0.0
        %v652 = vsel %vm649, %v641, 0.0
        %v653 = vsel %vm649, %v642, 0.0
        %v654 = vsel %vm649, %v643, 0.0
        %v655 = vld [vmem:[%s5] sm:$0xff]
        %v656 = vld [vmem:[%s5 + $0x8] sm:$0xff]
        %v657 = vld [vmem:[%s5 + $0x10] sm:$0xff]
        %v658 = vld [vmem:[%s5 + $0x18] sm:$0xff]
        %v659 = vld [vmem:[%s5 + $0x20] sm:$0xff]
        %v660 = vld [vmem:[%s5 + $0x28] sm:$0xff]
        %v661 = vld [vmem:[%s5 + $0x30] sm:$0xff]
        %v662 = vld [vmem:[%s5 + $0x38] sm:$0xff]
        %v663 = vld [vmem:[%s5 + $0x40] sm:$0xff]
        %v664 = vld [vmem:[%s5 + $0x48] sm:$0xff]
        %v665 = vld [vmem:[%s5 + $0x50] sm:$0xff]
        %v666 = vld [vmem:[%s5 + $0x58] sm:$0xff]
        %v667 = vld [vmem:[%s5 + $0x60] sm:$0xff]
        %v668 = vld [vmem:[%s5 + $0x68] sm:$0xff]
        %v669 = vld [vmem:[%s5 + $0x70] sm:$0xff]
        %v670 = vld [vmem:[%s5 + $0x78] sm:$0xff]
        %v671 = vld [vmem:[%s5 + $0x80] sm:$0xff]
        %v672 = vld [vmem:[%s5 + $0x88] sm:$0xff]
        %v673 = vld [vmem:[%s5 + $0x90] sm:$0xff]
        %v674 = vld [vmem:[%s5 + $0x98] sm:$0xff]
        %v675 = vld [vmem:[%s5 + $0xa0] sm:$0xff]
        %v676 = vld [vmem:[%s5 + $0xa8] sm:$0xff]
        %v677 = vld [vmem:[%s5 + $0xb0] sm:$0xff]
        %v678 = vld [vmem:[%s5 + $0xb8] sm:$0xff]
        %v679 = vld [vmem:[%s5 + $0xc0] sm:$0xff]
        %v680 = vld [vmem:[%s5 + $0xc8] sm:$0xff]
        %v681 = vld [vmem:[%s5 + $0xd0] sm:$0xff]
        %v682 = vld [vmem:[%s5 + $0xd8] sm:$0xff]
        %v683 = vld [vmem:[%s5 + $0xe0] sm:$0xff]
        %v684 = vld [vmem:[%s5 + $0xe8] sm:$0xff]
        %v685 = vld [vmem:[%s5 + $0xf0] sm:$0xff]
        %v686 = vld [vmem:[%s5 + $0xf8] sm:$0xff]
        %v687 = vld [vmem:[%s5 + $0x100] sm:$0xff]
        %v688 = vld [vmem:[%s5 + $0x108] sm:$0xff]
        %v689 = vld [vmem:[%s5 + $0x110] sm:$0xff]
        %v690 = vld [vmem:[%s5 + $0x118] sm:$0xff]
        %v691 = vld [vmem:[%s5 + $0x120] sm:$0xff]
        %v692 = vld [vmem:[%s5 + $0x128] sm:$0xff]
        %v693 = vld [vmem:[%s5 + $0x130] sm:$0xff]
        %v694 = vld [vmem:[%s5 + $0x138] sm:$0xff]
        %v695 = vld [vmem:[%s5 + $0x140] sm:$0xff]
        %v696 = vld [vmem:[%s5 + $0x148] sm:$0xff]
        %v697 = vld [vmem:[%s5 + $0x150] sm:$0xff]
        %v698 = vld [vmem:[%s5 + $0x158] sm:$0xff]
        %v699 = vld [vmem:[%s5 + $0x160] sm:$0xff]
        %v700 = vld [vmem:[%s5 + $0x168] sm:$0xff]
        %v701 = vld [vmem:[%s5 + $0x170] sm:$0xff]
        %v702 = vld [vmem:[%s5 + $0x178] sm:$0xff]
        %s703 = scalar_lea.vmem %s5, 384
        %v704 = vld [vmem:[%s703] sm:$0xff]
        %v705 = vld [vmem:[%s703 + $0x8] sm:$0xff]
        %v706 = vld [vmem:[%s703 + $0x10] sm:$0xff]
        %v707 = vld [vmem:[%s703 + $0x18] sm:$0xff]
        %v708 = vld [vmem:[%s703 + $0x20] sm:$0xff]
        %v709 = vld [vmem:[%s703 + $0x28] sm:$0xff]
        %v710 = vld [vmem:[%s703 + $0x30] sm:$0xff]
        %v711 = vld [vmem:[%s703 + $0x38] sm:$0xff]
        %v712 = vld [vmem:[%s703 + $0x40] sm:$0xff]
        %v713 = vld [vmem:[%s703 + $0x48] sm:$0xff]
        %v714 = vld [vmem:[%s703 + $0x50] sm:$0xff]
        %v715 = vld [vmem:[%s703 + $0x58] sm:$0xff]
        %v716 = vld [vmem:[%s703 + $0x60] sm:$0xff]
        %v717 = vld [vmem:[%s703 + $0x68] sm:$0xff]
        %v718 = vld [vmem:[%s703 + $0x70] sm:$0xff]
        %v719 = vld [vmem:[%s703 + $0x78] sm:$0xff]
        %v720 = vld [vmem:[%s703 + $0x80] sm:$0xff]
        %v721 = vld [vmem:[%s703 + $0x88] sm:$0xff]
        %v722 = vld [vmem:[%s703 + $0x90] sm:$0xff]
        %v723 = vld [vmem:[%s703 + $0x98] sm:$0xff]
        %v724 = vld [vmem:[%s703 + $0xa0] sm:$0xff]
        %v725 = vld [vmem:[%s703 + $0xa8] sm:$0xff]
        %v726 = vld [vmem:[%s703 + $0xb0] sm:$0xff]
        %v727 = vld [vmem:[%s703 + $0xb8] sm:$0xff]
        %v728 = vld [vmem:[%s703 + $0xc0] sm:$0xff]
        %v729 = vld [vmem:[%s703 + $0xc8] sm:$0xff]
        %v730 = vld [vmem:[%s703 + $0xd0] sm:$0xff]
        %v731 = vld [vmem:[%s703 + $0xd8] sm:$0xff]
        %v732 = vld [vmem:[%s703 + $0xe0] sm:$0xff]
        %v733 = vld [vmem:[%s703 + $0xe8] sm:$0xff]
        %v734 = vld [vmem:[%s703 + $0xf0] sm:$0xff]
        %v735 = vld [vmem:[%s703 + $0xf8] sm:$0xff]
        %v736 = vld [vmem:[%s703 + $0x100] sm:$0xff]
        %v737 = vld [vmem:[%s703 + $0x108] sm:$0xff]
        %v738 = vld [vmem:[%s703 + $0x110] sm:$0xff]
        %v739 = vld [vmem:[%s703 + $0x118] sm:$0xff]
        %v740 = vld [vmem:[%s703 + $0x120] sm:$0xff]
        %v741 = vld [vmem:[%s703 + $0x128] sm:$0xff]
        %v742 = vld [vmem:[%s703 + $0x130] sm:$0xff]
        %v743 = vld [vmem:[%s703 + $0x138] sm:$0xff]
        %v744 = vld [vmem:[%s703 + $0x140] sm:$0xff]
        %v745 = vld [vmem:[%s703 + $0x148] sm:$0xff]
        %v746 = vld [vmem:[%s703 + $0x150] sm:$0xff]
        %v747 = vld [vmem:[%s703 + $0x158] sm:$0xff]
        %v748 = vld [vmem:[%s703 + $0x160] sm:$0xff]
        %v749 = vld [vmem:[%s703 + $0x168] sm:$0xff]
        %v750 = vld [vmem:[%s703 + $0x170] sm:$0xff]
        %v751 = vld [vmem:[%s703 + $0x178] sm:$0xff]
        %752 = vmatprep.subr.mxu0 0.0
        %753 = vmatpush1.msra.mxu0 %v704
        %754 = vmatprep.subr.mxu0 0.0
        %755 = vmatpush1.msra.mxu0 %v705
        %756 = vmatprep.subr.mxu0 0.0
        %757 = vmatpush1.msra.mxu0 %v706
        %758 = vmatprep.subr.mxu0 0.0
        %759 = vmatpush1.msra.mxu0 %v707
        %760 = vmatprep.subr.mxu0 0.0
        %761 = vmatpush1.msra.mxu0 %v708
        %762 = vmatprep.subr.mxu0 0.0
        %763 = vmatpush1.msra.mxu0 %v709
        %764 = vmatprep.subr.mxu0 0.0
        %765 = vmatpush1.msra.mxu0 %v710
        %766 = vmatprep.subr.mxu0 0.0
        %767 = vmatpush1.msra.mxu0 %v711
        %768 = vmatprep.subr.mxu0 0.0
        %769 = vmatpush1.msra.mxu0 %v712
        %770 = vmatprep.subr.mxu0 0.0
        %771 = vmatpush1.msra.mxu0 %v713
        %772 = vmatprep.subr.mxu0 0.0
        %773 = vmatpush1.msra.mxu0 %v714
        %774 = vmatprep.subr.mxu0 0.0
        %775 = vmatpush1.msra.mxu0 %v715
        %776 = vmatprep.subr.mxu0 0.0
        %777 = vmatpush1.msra.mxu0 %v716
        %778 = vmatprep.subr.mxu0 0.0
        %779 = vmatpush1.msra.mxu0 %v717
        %780 = vmatprep.subr.mxu0 0.0
        %781 = vmatpush1.msra.mxu0 %v718
        %782 = vmatprep.subr.mxu0 0.0
        %783 = vmatpush1.msra.mxu0 %v719
        %784 = vmatprep.subr.mxu0 0.0
        %785 = vmatpush1.msra.mxu0 %v720
        %786 = vmatprep.subr.mxu0 0.0
        %787 = vmatpush1.msra.mxu0 %v721
        %788 = vmatprep.subr.mxu0 0.0
        %789 = vmatpush1.msra.mxu0 %v722
        %790 = vmatprep.subr.mxu0 0.0
        %791 = vmatpush1.msra.mxu0 %v723
        %792 = vmatprep.subr.mxu0 0.0
        %793 = vmatpush1.msra.mxu0 %v724
        %794 = vmatprep.subr.mxu0 0.0
        %795 = vmatpush1.msra.mxu0 %v725
        %796 = vmatprep.subr.mxu0 0.0
        %797 = vmatpush1.msra.mxu0 %v726
        %798 = vmatprep.subr.mxu0 0.0
        %799 = vmatpush1.msra.mxu0 %v727
        %800 = vmatprep.subr.mxu0 0.0
        %801 = vmatpush1.msra.mxu0 %v728
        %802 = vmatprep.subr.mxu0 0.0
        %803 = vmatpush1.msra.mxu0 %v729
        %804 = vmatprep.subr.mxu0 0.0
        %805 = vmatpush1.msra.mxu0 %v730
        %806 = vmatprep.subr.mxu0 0.0
        %807 = vmatpush1.msra.mxu0 %v731
        %808 = vmatprep.subr.mxu0 0.0
        %809 = vmatpush1.msra.mxu0 %v732
        %810 = vmatprep.subr.mxu0 0.0
        %811 = vmatpush1.msra.mxu0 %v733
        %812 = vmatprep.subr.mxu0 0.0
        %813 = vmatpush1.msra.mxu0 %v734
        %814 = vmatprep.subr.mxu0 0.0
        %815 = vmatpush1.msra.mxu0 %v735
        %816 = vmatprep.mubr.f32.mxu0 %v614
        %817 = vmatmul.mubr.f32.gmra.mrb[0].mxu0 %v635
        %v818 = vpop.f32.mrb[0].mxu0
        %v819 = vadd.f32 0.0, %v818
        %v820 = vpop.f32.mrb[0].mxu0
        %821 = vmatprep.mubr.f32.mxu0 %v615
        %822 = vmatmul.mubr.f32.gmra.mrb[0].mxu0 %v636
        %v823 = vpop.f32.mrb[0].mxu0
        %v824 = vadd.f32 0.0, %v823
        %v825 = vpop.f32.mrb[0].mxu0
        %826 = vmatprep.mubr.f32.mxu0 %v616
        %827 = vmatmul.mubr.f32.gmra.mrb[0].mxu0 %v637
        %v828 = vpop.f32.mrb[0].mxu0
        %v829 = vadd.f32 0.0, %v828
        %v830 = vpop.f32.mrb[0].mxu0
        %831 = vdwg.mxu0
        %832 = vmatprep.subr.mxu0 0.0
        %833 = vmatpush1.msra.mxu0 %v736
        %834 = vmatprep.subr.mxu0 0.0
        %835 = vmatpush1.msra.mxu0 %v737
        %836 = vmatprep.subr.mxu0 0.0
        %837 = vmatpush1.msra.mxu0 %v738
        %838 = vmatprep.subr.mxu0 0.0
        %839 = vmatpush1.msra.mxu0 %v739
        %840 = vmatprep.subr.mxu0 0.0
        %841 = vmatpush1.msra.mxu0 %v740
        %842 = vmatprep.subr.mxu0 0.0
        %843 = vmatpush1.msra.mxu0 %v741
        %844 = vmatprep.subr.mxu0 0.0
        %845 = vmatpush1.msra.mxu0 %v742
        %846 = vmatprep.subr.mxu0 0.0
        %847 = vmatpush1.msra.mxu0 %v743
        %848 = vmatprep.subr.mxu0 0.0
        %849 = vmatpush1.msra.mxu0 %v744
        %850 = vmatprep.subr.mxu0 0.0
        %851 = vmatpush1.msra.mxu0 %v745
        %852 = vmatprep.subr.mxu0 0.0
        %853 = vmatpush1.msra.mxu0 %v746
        %854 = vmatprep.subr.mxu0 0.0
        %855 = vmatpush1.msra.mxu0 %v747
        %856 = vmatprep.subr.mxu0 0.0
        %857 = vmatpush1.msra.mxu0 %v748
        %858 = vmatprep.subr.mxu0 0.0
        %859 = vmatpush1.msra.mxu0 %v749
        %860 = vmatprep.subr.mxu0 0.0
        %861 = vmatpush1.msra.mxu0 %v750
        %862 = vmatprep.subr.mxu0 0.0
        %863 = vmatpush1.msra.mxu0 %v751
        %864 = vmatprep.subr.mxu0 0.0
        %865 = vmatpush1.msra.mxu0 0.0
        %866 = vmatprep.subr.mxu0 0.0
        %867 = vmatpush1.msra.mxu0 0.0
        %868 = vmatprep.subr.mxu0 0.0
        %869 = vmatpush1.msra.mxu0 0.0
        %870 = vmatprep.subr.mxu0 0.0
        %871 = vmatpush1.msra.mxu0 0.0
        %872 = vmatprep.subr.mxu0 0.0
        %873 = vmatpush1.msra.mxu0 0.0
        %874 = vmatprep.subr.mxu0 0.0
        %875 = vmatpush1.msra.mxu0 0.0
        %876 = vmatprep.subr.mxu0 0.0
        %877 = vmatpush1.msra.mxu0 0.0
        %878 = vmatprep.subr.mxu0 0.0
        %879 = vmatpush1.msra.mxu0 0.0
        %880 = vmatprep.subr.mxu0 0.0
        %881 = vmatpush1.msra.mxu0 0.0
        %882 = vmatprep.subr.mxu0 0.0
        %883 = vmatpush1.msra.mxu0 0.0
        %884 = vmatprep.subr.mxu0 0.0
        %885 = vmatpush1.msra.mxu0 0.0
        %886 = vmatprep.subr.mxu0 0.0
        %887 = vmatpush1.msra.mxu0 0.0
        %888 = vmatprep.subr.mxu0 0.0
        %889 = vmatpush1.msra.mxu0 0.0
        %890 = vmatprep.subr.mxu0 0.0
        %891 = vmatpush1.msra.mxu0 0.0
        %892 = vmatprep.subr.mxu0 0.0
        %893 = vmatpush1.msra.mxu0 0.0
        %894 = vmatprep.subr.mxu0 0.0
        %895 = vmatpush1.msra.mxu0 0.0
        %896 = vmatprep.mubr.f32.mxu0 0.0
        %897 = vmatmul.mubr.f32.gmra.mrb[0].mxu0 %v651
        %v898 = vpop.f32.mrb[0].mxu0
        %v899 = vadd.f32 %v819, %v898
        %v900 = vpop.f32.mrb[0].mxu0
        %901 = vmatprep.mubr.f32.mxu0 0.0
        %902 = vmatmul.mubr.f32.gmra.mrb[0].mxu0 %v652
        %v903 = vpop.f32.mrb[0].mxu0
        %v904 = vadd.f32 %v824, %v903
        %v905 = vpop.f32.mrb[0].mxu0
        %906 = vmatprep.mubr.f32.mxu0 0.0
        %907 = vmatmul.mubr.f32.gmra.mrb[0].mxu0 %v653
        %v908 = vpop.f32.mrb[0].mxu0
        %v909 = vadd.f32 %v829, %v908
        %v910 = vpop.f32.mrb[0].mxu0
        %911 = vdwg.mxu0
        %s912 = scalar_lea.vmem %s5, 768
        %v913 = vld [vmem:[%s912] sm:$0xff]
        %v914 = vld [vmem:[%s912 + $0x8] sm:$0xff]
        %v915 = vld [vmem:[%s912 + $0x10] sm:$0xff]
        %v916 = vld [vmem:[%s912 + $0x18] sm:$0xff]
        %v917 = vld [vmem:[%s912 + $0x20] sm:$0xff]
        %v918 = vld [vmem:[%s912 + $0x28] sm:$0xff]
        %v919 = vld [vmem:[%s912 + $0x30] sm:$0xff]
        %v920 = vld [vmem:[%s912 + $0x38] sm:$0xff]
        %v921 = vld [vmem:[%s912 + $0x40] sm:$0xff]
        %v922 = vld [vmem:[%s912 + $0x48] sm:$0xff]
        %v923 = vld [vmem:[%s912 + $0x50] sm:$0xff]
        %v924 = vld [vmem:[%s912 + $0x58] sm:$0xff]
        %v925 = vld [vmem:[%s912 + $0x60] sm:$0xff]
        %v926 = vld [vmem:[%s912 + $0x68] sm:$0xff]
        %v927 = vld [vmem:[%s912 + $0x70] sm:$0xff]
        %v928 = vld [vmem:[%s912 + $0x78] sm:$0xff]
        %v929 = vld [vmem:[%s912 + $0x80] sm:$0xff]
        %v930 = vld [vmem:[%s912 + $0x88] sm:$0xff]
        %v931 = vld [vmem:[%s912 + $0x90] sm:$0xff]
        %v932 = vld [vmem:[%s912 + $0x98] sm:$0xff]
        %v933 = vld [vmem:[%s912 + $0xa0] sm:$0xff]
        %v934 = vld [vmem:[%s912 + $0xa8] sm:$0xff]
        %v935 = vld [vmem:[%s912 + $0xb0] sm:$0xff]
        %v936 = vld [vmem:[%s912 + $0xb8] sm:$0xff]
        %v937 = vld [vmem:[%s912 + $0xc0] sm:$0xff]
        %v938 = vld [vmem:[%s912 + $0xc8] sm:$0xff]
        %v939 = vld [vmem:[%s912 + $0xd0] sm:$0xff]
        %v940 = vld [vmem:[%s912 + $0xd8] sm:$0xff]
        %v941 = vld [vmem:[%s912 + $0xe0] sm:$0xff]
        %v942 = vld [vmem:[%s912 + $0xe8] sm:$0xff]
        %v943 = vld [vmem:[%s912 + $0xf0] sm:$0xff]
        %v944 = vld [vmem:[%s912 + $0xf8] sm:$0xff]
        %v945 = vld [vmem:[%s912 + $0x100] sm:$0xff]
        %v946 = vld [vmem:[%s912 + $0x108] sm:$0xff]
        %v947 = vld [vmem:[%s912 + $0x110] sm:$0xff]
        %v948 = vld [vmem:[%s912 + $0x118] sm:$0xff]
        %v949 = vld [vmem:[%s912 + $0x120] sm:$0xff]
        %v950 = vld [vmem:[%s912 + $0x128] sm:$0xff]
        %v951 = vld [vmem:[%s912 + $0x130] sm:$0xff]
        %v952 = vld [vmem:[%s912 + $0x138] sm:$0xff]
        %v953 = vld [vmem:[%s912 + $0x140] sm:$0xff]
        %v954 = vld [vmem:[%s912 + $0x148] sm:$0xff]
        %v955 = vld [vmem:[%s912 + $0x150] sm:$0xff]
        %v956 = vld [vmem:[%s912 + $0x158] sm:$0xff]
        %v957 = vld [vmem:[%s912 + $0x160] sm:$0xff]
        %v958 = vld [vmem:[%s912 + $0x168] sm:$0xff]
        %v959 = vld [vmem:[%s912 + $0x170] sm:$0xff]
        %v960 = vld [vmem:[%s912 + $0x178] sm:$0xff]
        %961 = vmatprep.subr.mxu0 0.0
        %962 = vmatpush1.msra.mxu0 %v913
        %963 = vmatprep.subr.mxu0 0.0
        %964 = vmatpush1.msra.mxu0 %v914
        %965 = vmatprep.subr.mxu0 0.0
        %966 = vmatpush1.msra.mxu0 %v915
        %967 = vmatprep.subr.mxu0 0.0
        %968 = vmatpush1.msra.mxu0 %v916
        %969 = vmatprep.subr.mxu0 0.0
        %970 = vmatpush1.msra.mxu0 %v917
        %971 = vmatprep.subr.mxu0 0.0
        %972 = vmatpush1.msra.mxu0 %v918
        %973 = vmatprep.subr.mxu0 0.0
        %974 = vmatpush1.msra.mxu0 %v919
        %975 = vmatprep.subr.mxu0 0.0
        %976 = vmatpush1.msra.mxu0 %v920
        %977 = vmatprep.subr.mxu0 0.0
        %978 = vmatpush1.msra.mxu0 %v921
        %979 = vmatprep.subr.mxu0 0.0
        %980 = vmatpush1.msra.mxu0 %v922
        %981 = vmatprep.subr.mxu0 0.0
        %982 = vmatpush1.msra.mxu0 %v923
        %983 = vmatprep.subr.mxu0 0.0
        %984 = vmatpush1.msra.mxu0 %v924
        %985 = vmatprep.subr.mxu0 0.0
        %986 = vmatpush1.msra.mxu0 %v925
        %987 = vmatprep.subr.mxu0 0.0
        %988 = vmatpush1.msra.mxu0 %v926
        %989 = vmatprep.subr.mxu0 0.0
        %990 = vmatpush1.msra.mxu0 %v927
        %991 = vmatprep.subr.mxu0 0.0
        %992 = vmatpush1.msra.mxu0 %v928
        %993 = vmatprep.subr.mxu0 0.0
        %994 = vmatpush1.msra.mxu0 %v929
        %995 = vmatprep.subr.mxu0 0.0
        %996 = vmatpush1.msra.mxu0 %v930
        %997 = vmatprep.subr.mxu0 0.0
        %998 = vmatpush1.msra.mxu0 %v931
        %999 = vmatprep.subr.mxu0 0.0
        %1000 = vmatpush1.msra.mxu0 %v932
        %1001 = vmatprep.subr.mxu0 0.0
        %1002 = vmatpush1.msra.mxu0 %v933
        %1003 = vmatprep.subr.mxu0 0.0
        %1004 = vmatpush1.msra.mxu0 %v934
        %1005 = vmatprep.subr.mxu0 0.0
        %1006 = vmatpush1.msra.mxu0 %v935
        %1007 = vmatprep.subr.mxu0 0.0
        %1008 = vmatpush1.msra.mxu0 %v936
        %1009 = vmatprep.subr.mxu0 0.0
        %1010 = vmatpush1.msra.mxu0 %v937
        %1011 = vmatprep.subr.mxu0 0.0
        %1012 = vmatpush1.msra.mxu0 %v938
        %1013 = vmatprep.subr.mxu0 0.0
        %1014 = vmatpush1.msra.mxu0 %v939
        %1015 = vmatprep.subr.mxu0 0.0
        %1016 = vmatpush1.msra.mxu0 %v940
        %1017 = vmatprep.subr.mxu0 0.0
        %1018 = vmatpush1.msra.mxu0 %v941
        %1019 = vmatprep.subr.mxu0 0.0
        %1020 = vmatpush1.msra.mxu0 %v942
        %1021 = vmatprep.subr.mxu0 0.0
        %1022 = vmatpush1.msra.mxu0 %v943
        %1023 = vmatprep.subr.mxu0 0.0
        %1024 = vmatpush1.msra.mxu0 %v944
        %1025 = vmatprep.mubr.f32.mxu0 %v615
        %1026 = vmatmul.mubr.f32.gmra.mrb[0].mxu0 %v636
        %v1027 = vpop.f32.mrb[0].mxu0
        %v1028 = vadd.f32 0.0, %v1027
        %v1029 = vpop.f32.mrb[0].mxu0
        %1030 = vmatprep.mubr.f32.mxu0 %v616
        %1031 = vmatmul.mubr.f32.gmra.mrb[0].mxu0 %v637
        %v1032 = vpop.f32.mrb[0].mxu0
        %v1033 = vadd.f32 0.0, %v1032
        %v1034 = vpop.f32.mrb[0].mxu0
        %1035 = vmatprep.mubr.f32.mxu0 %v617
        %1036 = vmatmul.mubr.f32.gmra.mrb[0].mxu0 %v638
        %v1037 = vpop.f32.mrb[0].mxu0
        %v1038 = vadd.f32 0.0, %v1037
        %v1039 = vpop.f32.mrb[0].mxu0
        %1040 = vdwg.mxu0
        %1041 = vmatprep.subr.mxu0 0.0
        %1042 = vmatpush1.msra.mxu0 %v945
        %1043 = vmatprep.subr.mxu0 0.0
        %1044 = vmatpush1.msra.mxu0 %v946
        %1045 = vmatprep.subr.mxu0 0.0
        %1046 = vmatpush1.msra.mxu0 %v947
        %1047 = vmatprep.subr.mxu0 0.0
        %1048 = vmatpush1.msra.mxu0 %v948
        %1049 = vmatprep.subr.mxu0 0.0
        %1050 = vmatpush1.msra.mxu0 %v949
        %1051 = vmatprep.subr.mxu0 0.0
        %1052 = vmatpush1.msra.mxu0 %v950
        %1053 = vmatprep.subr.mxu0 0.0
        %1054 = vmatpush1.msra.mxu0 %v951
        %1055 = vmatprep.subr.mxu0 0.0
        %1056 = vmatpush1.msra.mxu0 %v952
        %1057 = vmatprep.subr.mxu0 0.0
        %1058 = vmatpush1.msra.mxu0 %v953
        %1059 = vmatprep.subr.mxu0 0.0
        %1060 = vmatpush1.msra.mxu0 %v954
        %1061 = vmatprep.subr.mxu0 0.0
        %1062 = vmatpush1.msra.mxu0 %v955
        %1063 = vmatprep.subr.mxu0 0.0
        %1064 = vmatpush1.msra.mxu0 %v956
        %1065 = vmatprep.subr.mxu0 0.0
        %1066 = vmatpush1.msra.mxu0 %v957
        %1067 = vmatprep.subr.mxu0 0.0
        %1068 = vmatpush1.msra.mxu0 %v958
        %1069 = vmatprep.subr.mxu0 0.0
        %1070 = vmatpush1.msra.mxu0 %v959
        %1071 = vmatprep.subr.mxu0 0.0
        %1072 = vmatpush1.msra.mxu0 %v960
        %1073 = vmatprep.subr.mxu0 0.0
        %1074 = vmatpush1.msra.mxu0 0.0
        %1075 = vmatprep.subr.mxu0 0.0
        %1076 = vmatpush1.msra.mxu0 0.0
        %1077 = vmatprep.subr.mxu0 0.0
        %1078 = vmatpush1.msra.mxu0 0.0
        %1079 = vmatprep.subr.mxu0 0.0
        %1080 = vmatpush1.msra.mxu0 0.0
        %1081 = vmatprep.subr.mxu0 0.0
        %1082 = vmatpush1.msra.mxu0 0.0
        %1083 = vmatprep.subr.mxu0 0.0
        %1084 = vmatpush1.msra.mxu0 0.0
        %1085 = vmatprep.subr.mxu0 0.0
        %1086 = vmatpush1.msra.mxu0 0.0
        %1087 = vmatprep.subr.mxu0 0.0
        %1088 = vmatpush1.msra.mxu0 0.0
        %1089 = vmatprep.subr.mxu0 0.0
        %1090 = vmatpush1.msra.mxu0 0.0
        %1091 = vmatprep.subr.mxu0 0.0
        %1092 = vmatpush1.msra.mxu0 0.0
        %1093 = vmatprep.subr.mxu0 0.0
        %1094 = vmatpush1.msra.mxu0 0.0
        %1095 = vmatprep.subr.mxu0 0.0
        %1096 = vmatpush1.msra.mxu0 0.0
        %1097 = vmatprep.subr.mxu0 0.0
        %1098 = vmatpush1.msra.mxu0 0.0
        %1099 = vmatprep.subr.mxu0 0.0
        %1100 = vmatpush1.msra.mxu0 0.0
        %1101 = vmatprep.subr.mxu0 0.0
        %1102 = vmatpush1.msra.mxu0 0.0
        %1103 = vmatprep.subr.mxu0 0.0
        %1104 = vmatpush1.msra.mxu0 0.0
        %1105 = vmatprep.mubr.f32.mxu0 0.0
        %1106 = vmatmul.mubr.f32.gmra.mrb[0].mxu0 %v652
        %v1107 = vpop.f32.mrb[0].mxu0
        %v1108 = vadd.f32 %v1028, %v1107
        %v1109 = vpop.f32.mrb[0].mxu0
        %1110 = vmatprep.mubr.f32.mxu0 0.0
        %1111 = vmatmul.mubr.f32.gmra.mrb[0].mxu0 %v653
        %v1112 = vpop.f32.mrb[0].mxu0
        %v1113 = vadd.f32 %v1033, %v1112
        %v1114 = vpop.f32.mrb[0].mxu0
        %1115 = vmatprep.mubr.f32.mxu0 0.0
        %1116 = vmatmul.mubr.f32.gmra.mrb[0].mxu0 %v654
        %v1117 = vpop.f32.mrb[0].mxu0
        %v1118 = vadd.f32 %v1038, %v1117
        %v1119 = vpop.f32.mrb[0].mxu0
        %1120 = vdwg.mxu0
        %1121 = vmatprep.subr.mxu0 0.0
        %1122 = vmatpush1.msra.mxu0 %v655
        %1123 = vmatprep.subr.mxu0 0.0
        %1124 = vmatpush1.msra.mxu0 %v656
        %1125 = vmatprep.subr.mxu0 0.0
        %1126 = vmatpush1.msra.mxu0 %v657
        %1127 = vmatprep.subr.mxu0 0.0
        %1128 = vmatpush1.msra.mxu0 %v658
        %1129 = vmatprep.subr.mxu0 0.0
        %1130 = vmatpush1.msra.mxu0 %v659
        %1131 = vmatprep.subr.mxu0 0.0
        %1132 = vmatpush1.msra.mxu0 %v660
        %1133 = vmatprep.subr.mxu0 0.0
        %1134 = vmatpush1.msra.mxu0 %v661
        %1135 = vmatprep.subr.mxu0 0.0
        %1136 = vmatpush1.msra.mxu0 %v662
        %1137 = vmatprep.subr.mxu0 0.0
        %1138 = vmatpush1.msra.mxu0 %v663
        %1139 = vmatprep.subr.mxu0 0.0
        %1140 = vmatpush1.msra.mxu0 %v664
        %1141 = vmatprep.subr.mxu0 0.0
        %1142 = vmatpush1.msra.mxu0 %v665
        %1143 = vmatprep.subr.mxu0 0.0
        %1144 = vmatpush1.msra.mxu0 %v666
        %1145 = vmatprep.subr.mxu0 0.0
        %1146 = vmatpush1.msra.mxu0 %v667
        %1147 = vmatprep.subr.mxu0 0.0
        %1148 = vmatpush1.msra.mxu0 %v668
        %1149 = vmatprep.subr.mxu0 0.0
        %1150 = vmatpush1.msra.mxu0 %v669
        %1151 = vmatprep.subr.mxu0 0.0
        %1152 = vmatpush1.msra.mxu0 %v670
        %1153 = vmatprep.subr.mxu0 0.0
        %1154 = vmatpush1.msra.mxu0 %v671
        %1155 = vmatprep.subr.mxu0 0.0
        %1156 = vmatpush1.msra.mxu0 %v672
        %1157 = vmatprep.subr.mxu0 0.0
        %1158 = vmatpush1.msra.mxu0 %v673
        %1159 = vmatprep.subr.mxu0 0.0
        %1160 = vmatpush1.msra.mxu0 %v674
        %1161 = vmatprep.subr.mxu0 0.0
        %1162 = vmatpush1.msra.mxu0 %v675
        %1163 = vmatprep.subr.mxu0 0.0
        %1164 = vmatpush1.msra.mxu0 %v676
        %1165 = vmatprep.subr.mxu0 0.0
        %1166 = vmatpush1.msra.mxu0 %v677
        %1167 = vmatprep.subr.mxu0 0.0
        %1168 = vmatpush1.msra.mxu0 %v678
        %1169 = vmatprep.subr.mxu0 0.0
        %1170 = vmatpush1.msra.mxu0 %v679
        %1171 = vmatprep.subr.mxu0 0.0
        %1172 = vmatpush1.msra.mxu0 %v680
        %1173 = vmatprep.subr.mxu0 0.0
        %1174 = vmatpush1.msra.mxu0 %v681
        %1175 = vmatprep.subr.mxu0 0.0
        %1176 = vmatpush1.msra.mxu0 %v682
        %1177 = vmatprep.subr.mxu0 0.0
        %1178 = vmatpush1.msra.mxu0 %v683
        %1179 = vmatprep.subr.mxu0 0.0
        %1180 = vmatpush1.msra.mxu0 %v684
        %1181 = vmatprep.subr.mxu0 0.0
        %1182 = vmatpush1.msra.mxu0 %v685
        %1183 = vmatprep.subr.mxu0 0.0
        %1184 = vmatpush1.msra.mxu0 %v686
        %1185 = vmatprep.mubr.f32.mxu0 %v613
        %1186 = vmatmul.mubr.f32.gmra.mrb[0].mxu0 %v634
        %v1187 = vpop.f32.mrb[0].mxu0
        %v1188 = vadd.f32 %v899, %v1187
        %v1189 = vpop.f32.mrb[0].mxu0
        %1190 = vmatprep.mubr.f32.mxu0 %v614
        %1191 = vmatmul.mubr.f32.gmra.mrb[0].mxu0 %v635
        %v1192 = vpop.f32.mrb[0].mxu0
        %v1193 = vadd.f32 %v904, %v1192
        %v1194 = vpop.f32.mrb[0].mxu0
        %1195 = vmatprep.mubr.f32.mxu0 %v615
        %1196 = vmatmul.mubr.f32.gmra.mrb[0].mxu0 %v636
        %v1197 = vpop.f32.mrb[0].mxu0
        %v1198 = vadd.f32 %v909, %v1197
        %v1199 = vpop.f32.mrb[0].mxu0
        %1200 = vdwg.mxu0
        %1201 = vmatprep.subr.mxu0 0.0
        %1202 = vmatpush1.msra.mxu0 %v687
        %1203 = vmatprep.subr.mxu0 0.0
        %1204 = vmatpush1.msra.mxu0 %v688
        %1205 = vmatprep.subr.mxu0 0.0
        %1206 = vmatpush1.msra.mxu0 %v689
        %1207 = vmatprep.subr.mxu0 0.0
        %1208 = vmatpush1.msra.mxu0 %v690
        %1209 = vmatprep.subr.mxu0 0.0
        %1210 = vmatpush1.msra.mxu0 %v691
        %1211 = vmatprep.subr.mxu0 0.0
        %1212 = vmatpush1.msra.mxu0 %v692
        %1213 = vmatprep.subr.mxu0 0.0
        %1214 = vmatpush1.msra.mxu0 %v693
        %1215 = vmatprep.subr.mxu0 0.0
        %1216 = vmatpush1.msra.mxu0 %v694
        %1217 = vmatprep.subr.mxu0 0.0
        %1218 = vmatpush1.msra.mxu0 %v695
        %1219 = vmatprep.subr.mxu0 0.0
        %1220 = vmatpush1.msra.mxu0 %v696
        %1221 = vmatprep.subr.mxu0 0.0
        %1222 = vmatpush1.msra.mxu0 %v697
        %1223 = vmatprep.subr.mxu0 0.0
        %1224 = vmatpush1.msra.mxu0 %v698
        %1225 = vmatprep.subr.mxu0 0.0
        %1226 = vmatpush1.msra.mxu0 %v699
        %1227 = vmatprep.subr.mxu0 0.0
        %1228 = vmatpush1.msra.mxu0 %v700
        %1229 = vmatprep.subr.mxu0 0.0
        %1230 = vmatpush1.msra.mxu0 %v701
        %1231 = vmatprep.subr.mxu0 0.0
        %1232 = vmatpush1.msra.mxu0 %v702
        %1233 = vmatprep.subr.mxu0 0.0
        %1234 = vmatpush1.msra.mxu0 0.0
        %1235 = vmatprep.subr.mxu0 0.0
        %1236 = vmatpush1.msra.mxu0 0.0
        %1237 = vmatprep.subr.mxu0 0.0
        %1238 = vmatpush1.msra.mxu0 0.0
        %1239 = vmatprep.subr.mxu0 0.0
        %1240 = vmatpush1.msra.mxu0 0.0
        %1241 = vmatprep.subr.mxu0 0.0
        %1242 = vmatpush1.msra.mxu0 0.0
        %1243 = vmatprep.subr.mxu0 0.0
        %1244 = vmatpush1.msra.mxu0 0.0
        %1245 = vmatprep.subr.mxu0 0.0
        %1246 = vmatpush1.msra.mxu0 0.0
        %1247 = vmatprep.subr.mxu0 0.0
        %1248 = vmatpush1.msra.mxu0 0.0
        %1249 = vmatprep.subr.mxu0 0.0
        %1250 = vmatpush1.msra.mxu0 0.0
        %1251 = vmatprep.subr.mxu0 0.0
        %1252 = vmatpush1.msra.mxu0 0.0
        %1253 = vmatprep.subr.mxu0 0.0
        %1254 = vmatpush1.msra.mxu0 0.0
        %1255 = vmatprep.subr.mxu0 0.0
        %1256 = vmatpush1.msra.mxu0 0.0
        %1257 = vmatprep.subr.mxu0 0.0
        %1258 = vmatpush1.msra.mxu0 0.0
        %1259 = vmatprep.subr.mxu0 0.0
        %1260 = vmatpush1.msra.mxu0 0.0
        %1261 = vmatprep.subr.mxu0 0.0
        %1262 = vmatpush1.msra.mxu0 0.0
        %1263 = vmatprep.subr.mxu0 0.0
        %1264 = vmatpush1.msra.mxu0 0.0
        %1265 = vmatprep.mubr.f32.mxu0 0.0
        %1266 = vmatmul.mubr.f32.gmra.mrb[0].mxu0 %v650
        %v1267 = vpop.f32.mrb[0].mxu0
        %v1268 = vadd.f32 %v1188, %v1267
        %v1269 = vpop.f32.mrb[0].mxu0
        %1270 = vmatprep.mubr.f32.mxu0 0.0
        %1271 = vmatmul.mubr.f32.gmra.mrb[0].mxu0 %v651
        %v1272 = vpop.f32.mrb[0].mxu0
        %v1273 = vadd.f32 %v1193, %v1272
        %v1274 = vpop.f32.mrb[0].mxu0
        %1275 = vmatprep.mubr.f32.mxu0 0.0
        %1276 = vmatmul.mubr.f32.gmra.mrb[0].mxu0 %v652
        %v1277 = vpop.f32.mrb[0].mxu0
        %v1278 = vadd.f32 %v1198, %v1277
        %v1279 = vpop.f32.mrb[0].mxu0
        %1280 = vdwg.mxu0
        %v1281 = vadd.f32 %v1268, %v1108
        %v1282 = vadd.f32 %v1273, %v1113
        %v1283 = vadd.f32 %v1278, %v1118
        %v1284 = vld [vmem:[%s6] sm:$0x1]
        %v1286 = vlaneseq
        %v1287 = vshrl.u32 %v1286, 7
        %v1288 = vsub.s32 0, %v1287
        %v1289 = vrot.slane %v1284, %v1288
        %v1291 = vadd.f32 %v1281, %v1289
        %v1292 = vadd.f32 %v1282, %v1289
        %v1293 = vadd.f32 %v1283, %v1289
        %vm1294 = vcmp.gt.f32.partialorder %v1291, 0.0
        %vm1295 = vcmp.gt.f32.partialorder %v1292, 0.0
        %vm1296 = vcmp.gt.f32.partialorder %v1293, 0.0
        %v1297 = vmul.f32 %v1291, 0.1
        %v1298 = vmul.f32 %v1292, 0.1
        %v1299 = vmul.f32 %v1293, 0.1
        %v1300 = vsel %vm1294, %v1291, %v1297
        %v1301 = vsel %vm1295, %v1292, %v1298
        %v1302 = vsel %vm1296, %v1293, %v1299
        %v1303 = vadd.f32 %v1300, %v447
        %v1304 = vadd.f32 %v1301, %v448
        %v1305 = vadd.f32 %v1302, %v449
        %1306 = vst [vmem:[%s390] sm:$0xff] %v1303
        %1307 = vst [vmem:[%s390 + $0x8] sm:$0xff] %v1304
        %1308 = vst [vmem:[%s390 + $0x10] sm:$0xff] %v1305
        %s1309 = sand.u32 %s224, 1
        %s1310 = sand.u32 %s224, 1
        %s1311 = smul.addr %s1310, 24
        %s1312 = scalar_lea.vmem [#allocation2], %s1311
        // Predicated region
        $region49: #{resblock_forward.4} parent=47 // pred_check
          %p1313 = pneg %p234
        $region50: #{resblock_forward.4} parent=47 // pred_check_branch
          %1315 = sbr.rel (%p1313) target = $region52
        $region51: #{resblock_forward.4} parent=47 // pred_region
          %s1316 = smul.u32 3, %s23
          %s1317 = ssub.s32 8, %s1316
          %p1318 = scmp.lt.s32.totalorder %s1317, 3
          %s1319 = scalar_select %p1318, %s1317, 3
          %s1320 = smul.u32 128, %s1319
          %p1321 = scmp.ne.s32.totalorder 0, %s1320
          %s1322 = smul.addr %s22, 8
          %s1323 = sadd.s32 %s1316, %s1322
          %s1324 = smul.addr %s1323, 8
          %s1325 = scalar_lea.vmem %s7, %s1324
          // Predicated region
          $region53: #{resblock_forward.4} parent=51 // pred_check
            %p1326 = pneg %p1321
          $region54: #{resblock_forward.4} parent=51 // pred_check_branch
            %1328 = sbr.rel (%p1326) target = $region56
          $region55: #{resblock_forward.4} parent=51 // pred_region
            // Predicated region
            $region57: #{resblock_forward.4} parent=55 // pred_check
              _
            $region58: #{resblock_forward.4} parent=55 // pred_check_branch
              %1330 = sbr.rel (0) target = $region60
            $region59: #{resblock_forward.4} parent=55 // pred_region
              // Predicated region
              $region79: #{resblock_forward.4} parent=59 // pred_check
                _
              $region80: #{resblock_forward.4} parent=59 // pred_check_branch
                %1384 = sbr.rel (0) target = $region82
              $region81: #{resblock_forward.4} parent=59 // pred_region
                %s1385 = sdiv.u32.pop %s1319, 3
                %s1386 = srem.u32.pop %s1319, 3
                // While loop
                $region83: #{resblock_forward.4} parent=81 // loop_pre_header
                  _
                $region84: #{resblock_forward.4} parent=81 // loop_header
                  %s1388 = sphi 0, %s1390
                  %p1389 = scmp.ge.s32.totalorder %s1388, %s1385
                  %s1393 = sphi 0, %s1404
                  %s1394 = sphi %s1312, %s1407
                  %s1395 = sphi %s1325, %s1408
                $region85: #{resblock_forward.4} parent=81 // loop_header_branch
                  %1392 = sbr.rel (%p1389) target = $region89
                $region86: #{resblock_forward.4} parent=81 // loop_body
                  %v1396 = vld [vmem:[%s1394] sm:$0xff]
                  %1397 = vst [vmem:[%s1395] sm:$0xff] %v1396
                  %v1398 = vld [vmem:[%s1394 + $0x8] sm:$0xff]
                  %1399 = vst [vmem:[%s1395 + $0x8] sm:$0xff] %v1398
                  %v1400 = vld [vmem:[%s1394 + $0x10] sm:$0xff]
                  %1401 = vst [vmem:[%s1395 + $0x10] sm:$0xff] %v1400
                  %s1402 = sadd.s32 1, %s1393
                  %p1403 = scmp.ge.s32.totalorder %s1402, %s1385
                  %s1404 = scalar_select %p1403, 0, %s1402
                  %s1405 = smul.u32 %s1404, 24
                  %s1406 = smul.u32 %s1404, 24
                  %s1407 = scalar_lea.vmem %s1312, %s1405 [#allocation2]
                  %s1408 = scalar_lea.vmem %s1325, %s1406
                $region87: #{resblock_forward.4} parent=81 // loop_footer
                  %s1390 = sadd.s32 %s1388, 1
                $region88: #{resblock_forward.4} parent=81 // loop_footer_branch
                  %1387 = sbr.rel target = $region84
                $region89: #{resblock_forward.4} parent=81 // loop_exit
                  _
                %s1409 = sdiv.u32.pop %s1319, 3
                %s1410 = srem.u32.pop %s1319, 3
                %s1411 = smul.u32 %s1409, 3
                %s1412 = smul.u32 8, %s1411
                %s1413 = scalar_lea.vmem %s1312, %s1412 [#allocation2]
                %s1414 = smul.u32 8, %s1411
                %s1415 = scalar_lea.vmem %s1325, %s1414
                // While loop
                $region90: #{resblock_forward.4} parent=81 // loop_pre_header
                  _
                $region91: #{resblock_forward.4} parent=81 // loop_header
                  %s1417 = sphi 0, %s1419
                  %p1418 = scmp.ge.s32.totalorder %s1417, %s1410
                  %s1422 = sphi 0, %s1429
                  %s1423 = sphi %s1413, %s1432
                  %s1424 = sphi %s1415, %s1433
                $region92: #{resblock_forward.4} parent=81 // loop_header_branch
                  %1421 = sbr.rel (%p1418) target = $region96
                $region93: #{resblock_forward.4} parent=81 // loop_body
                  %v1425 = vld [vmem:[%s1423] sm:$0xff]
                  %1426 = vst [vmem:[%s1424] sm:$0xff] %v1425
                  %s1427 = sadd.s32 1, %s1422
                  %p1428 = scmp.ge.s32.totalorder %s1427, %s1410
                  %s1429 = scalar_select %p1428, 0, %s1427
                  %s1430 = smul.u32 %s1429, 8
                  %s1431 = smul.u32 %s1429, 8
                  %s1432 = scalar_lea.vmem %s1413, %s1430 [#allocation2]
                  %s1433 = scalar_lea.vmem %s1415, %s1431
                $region94: #{resblock_forward.4} parent=81 // loop_footer
                  %s1419 = sadd.s32 %s1417, 1
                $region95: #{resblock_forward.4} parent=81 // loop_footer_branch
                  %1416 = sbr.rel target = $region91
                $region96: #{resblock_forward.4} parent=81 // loop_exit
                  _
              $region82: #{resblock_forward.4} parent=59 // pred_fallthru
                _
              // Predicated region
              $region97: #{resblock_forward.4} parent=59 // pred_check
                _
              $region98: #{resblock_forward.4} parent=59 // pred_check_branch
                %1435 = sbr.rel target = $region100
              $region99: #{resblock_forward.4} parent=59 // pred_region
                _
              $region100: #{resblock_forward.4} parent=59 // pred_fallthru
                _
            $region60: #{resblock_forward.4} parent=55 // pred_fallthru
              _
            // Predicated region
            $region61: #{resblock_forward.4} parent=55 // pred_check
              _
            $region62: #{resblock_forward.4} parent=55 // pred_check_branch
              %1332 = sbr.rel target = $region64
            $region63: #{resblock_forward.4} parent=55 // pred_region
              %s1334 = sdiv.u32.pop %s1319, 3
              %s1335 = srem.u32.pop %s1319, 3
              // While loop
              $region65: #{resblock_forward.4} parent=63 // loop_pre_header
                _
              $region66: #{resblock_forward.4} parent=63 // loop_header
                %s1337 = sphi 0, %s1339
                %p1338 = scmp.ge.s32.totalorder %s1337, %s1334
                %s1342 = sphi 0, %s1353
                %s1343 = sphi %s1312, %s1356
                %s1344 = sphi %s1325, %s1357
              $region67: #{resblock_forward.4} parent=63 // loop_header_branch
                %1341 = sbr.rel (%p1338) target = $region71
              $region68: #{resblock_forward.4} parent=63 // loop_body
                %v1345 = vld [vmem:[%s1343] sm:$0xff]
                %1346 = vst [vmem:[%s1344] sm:$0xff] %v1345
                %v1347 = vld [vmem:[%s1343 + $0x8] sm:$0xff]
                %1348 = vst [vmem:[%s1344 + $0x8] sm:$0xff] %v1347
                %v1349 = vld [vmem:[%s1343 + $0x10] sm:$0xff]
                %1350 = vst [vmem:[%s1344 + $0x10] sm:$0xff] %v1349
                %s1351 = sadd.s32 1, %s1342
                %p1352 = scmp.ge.s32.totalorder %s1351, %s1334
                %s1353 = scalar_select %p1352, 0, %s1351
                %s1354 = smul.u32 %s1353, 24
                %s1355 = smul.u32 %s1353, 24
                %s1356 = scalar_lea.vmem %s1312, %s1354 [#allocation2]
                %s1357 = scalar_lea.vmem %s1325, %s1355
              $region69: #{resblock_forward.4} parent=63 // loop_footer
                %s1339 = sadd.s32 %s1337, 1
              $region70: #{resblock_forward.4} parent=63 // loop_footer_branch
                %1336 = sbr.rel target = $region66
              $region71: #{resblock_forward.4} parent=63 // loop_exit
                _
              %s1358 = sdiv.u32.pop %s1319, 3
              %s1359 = srem.u32.pop %s1319, 3
              %s1360 = smul.u32 %s1358, 3
              %s1361 = smul.u32 8, %s1360
              %s1362 = scalar_lea.vmem %s1312, %s1361 [#allocation2]
              %s1363 = smul.u32 8, %s1360
              %s1364 = scalar_lea.vmem %s1325, %s1363
              // While loop
              $region72: #{resblock_forward.4} parent=63 // loop_pre_header
                _
              $region73: #{resblock_forward.4} parent=63 // loop_header
                %s1366 = sphi 0, %s1368
                %p1367 = scmp.ge.s32.totalorder %s1366, %s1359
                %s1371 = sphi 0, %s1378
                %s1372 = sphi %s1362, %s1381
                %s1373 = sphi %s1364, %s1382
              $region74: #{resblock_forward.4} parent=63 // loop_header_branch
                %1370 = sbr.rel (%p1367) target = $region78
              $region75: #{resblock_forward.4} parent=63 // loop_body
                %v1374 = vld [vmem:[%s1372] sm:$0xff]
                %1375 = vst [vmem:[%s1373] sm:$0xff] %v1374
                %s1376 = sadd.s32 1, %s1371
                %p1377 = scmp.ge.s32.totalorder %s1376, %s1359
                %s1378 = scalar_select %p1377, 0, %s1376
                %s1379 = smul.u32 %s1378, 8
                %s1380 = smul.u32 %s1378, 8
                %s1381 = scalar_lea.vmem %s1362, %s1379 [#allocation2]
                %s1382 = scalar_lea.vmem %s1364, %s1380
              $region76: #{resblock_forward.4} parent=63 // loop_footer
                %s1368 = sadd.s32 %s1366, 1
              $region77: #{resblock_forward.4} parent=63 // loop_footer_branch
                %1365 = sbr.rel target = $region73
              $region78: #{resblock_forward.4} parent=63 // loop_exit
                _
            $region64: #{resblock_forward.4} parent=55 // pred_fallthru
              _
          $region56: #{resblock_forward.4} parent=51 // pred_fallthru
            _
          %1436 = vnop
        $region52: #{resblock_forward.4} parent=47 // pred_fallthru
          _
      $region48: #{resblock_forward.4} parent=5 // pred_fallthru
        _
      %p1437 = scmp.le.s32.totalorder 2, %s13
      // Predicated region
      $region101: #{resblock_forward.4} parent=5 // pred_check
        %p1438 = pneg %p1437
      $region102: #{resblock_forward.4} parent=5 // pred_check_branch
        %1440 = sbr.rel (%p1438) target = $region104
      $region103: #{resblock_forward.4} parent=5 // pred_region
        %s1441 = ssub.s32 %s13, 2
        // Predicated region
        $region105: #{resblock_forward.4} parent=103 // pred_check
          %p1442 = pneg %p240
        $region106: #{resblock_forward.4} parent=103 // pred_check_branch
          %1444 = sbr.rel (%p1442) target = $region108
        $region107: #{resblock_forward.4} parent=103 // pred_region
          %s1445 = sand.u32 %s225, 1
          %s1446 = sand.u32 %s225, 1
          %s1447 = smul.addr %s1446, 24
          %s1448 = scalar_lea.vmem [#allocation2], %s1447
        $region108: #{resblock_forward.4} parent=103 // pred_fallthru
          _
      $region104: #{resblock_forward.4} parent=5 // pred_fallthru
        _
    $region6: #{resblock_forward.4} parent=1 // loop_footer
      %s17 = sadd.s32 1, %s13
    $region7: #{resblock_forward.4} parent=1 // loop_footer_branch
      %12 = sbr.rel target = $region3
    $region8: #{resblock_forward.4} parent=1 // loop_exit
      _

</llo_original>
